<compile_context>
chip_gen: v7x
topology: tpu7x:2x2x1
jax: 0.10.0
libtpu: 0.0.40
codegen_flags: <defaults>
</compile_context>

<pallas_src>
import jax
import jax.numpy as jnp
from jax.experimental import pallas as pl
from jax.experimental.pallas import tpu as pltpu

_LANES = 128
# native sublane multiple per element byte-width: f32 -> 8, bf16/f16 -> 16, fp8 -> 32
_SUBLANE = {4: 8, 2: 16, 1: 32}


def _hardswish_kernel(x_ref, o_ref):
    x = x_ref[...].astype(jnp.float32)
    r6 = jnp.clip(x + 3.0, 0.0, 6.0)              # relu6(x + 3)
    o_ref[...] = (x * r6 * (1.0 / 6.0)).astype(o_ref.dtype)


def _hardswish_jnp(x):
    xf = x.astype(jnp.float32)
    return (xf * jnp.clip(xf + 3.0, 0.0, 6.0) * (1.0 / 6.0)).astype(x.dtype)


def _round_up(v, m):
    return ((v + m - 1) // m) * m


def _vmem_budgets():
    """Return (tile_bytes, vmem_limit_bytes), TPU-generation aware."""
    try:
        cap = pltpu.get_tpu_info().vmem_capacity_bytes
    except Exception:               # unknown -> assume the smallest (v7x: 64 MiB/TC)
        cap = 64 << 20
    if cap >= (96 << 20):           # v5e / v6e: 128 MiB physical VMEM
        return 8 << 20, 48 << 20
    return 4 << 20, 32 << 20        # v7x: stay well clear of the 64 MiB/TC ceiling


def _hardswish_slab(slab, tile_bytes, vmem_limit_bytes):
    """Run the Pallas kernel on a lane-dense (rows, 128) slab."""
    rows, lanes = slab.shape
    assert lanes == _LANES
    dtype = slab.dtype
    itemsize = jnp.dtype(dtype).itemsize
    sub = _SUBLANE.get(itemsize, 8)
    rows_up = _round_up(rows, sub)

    # VMEM-budget cap on rows per block.
    tr_cap = max((tile_bytes // (_LANES * itemsize)) // sub * sub, sub)
    # Aim for >= 4 grid steps whenever rows allow (pipeline overlap + v7x
    # dual-TensorCore sharding), but keep blocks >= ~256 KiB so per-step
    # overhead stays in the noise.
    min_tr = max(sub, ((256 << 10) // (_LANES * itemsize)) // sub * sub)
    want = _round_up(-(-rows // 4), sub)
    tr = min(tr_cap, max(want, min_tr), rows_up)

    grid = (pl.cdiv(rows, tr),)     # last block may be partial -> masked store

    return pl.pallas_call(
        _hardswish_kernel,
        out_shape=jax.ShapeDtypeStruct((rows, _LANES), dtype),
        grid_spec=pltpu.PrefetchScalarGridSpec(
            num_scalar_prefetch=0,
            grid=grid,
            in_specs=[pl.BlockSpec((tr, _LANES), lambda i: (i, 0))],
            out_specs=pl.BlockSpec((tr, _LANES), lambda i: (i, 0)),
        ),
        # Output has identical shape/dtype -> reuse the input HBM buffer when
        # it is donatable.
        input_output_aliases={0: 0},
        cost_estimate=pl.CostEstimate(
            flops=4 * rows * _LANES,
            transcendentals=0,
            bytes_accessed=2 * rows * _LANES * itemsize,
        ),
        compiler_params=pltpu.CompilerParams(
            # "parallel" lets v7x shard the row loop across both TensorCores.
            dimension_semantics=("parallel",),
            vmem_limit_bytes=vmem_limit_bytes,
        ),
    )(slab)


def hardswish(x: jax.Array, *, tile_bytes: int | None = None,
              small_fallback_bytes: int = 1 << 20) -> jax.Array:
    """Elementwise HardSwish: x * relu6(x + 3) / 6. Any shape, float dtype."""
    if not jnp.issubdtype(x.dtype, jnp.floating):
        raise TypeError(f"hardswish expects a floating dtype, got {x.dtype}")
    n = x.size
    if n == 0:
        return x
    itemsize = jnp.dtype(x.dtype).itemsize

    # Tiny activations: fixed custom-call cost dominates and XLA can fuse this
    # into the producer -> plain jnp is strictly faster.
    if n * itemsize < small_fallback_bytes:
        return _hardswish_jnp(x)

    default_tile, vmem_limit = _vmem_budgets()
    tb = default_tile if tile_bytes is None else tile_bytes

    flat = x.reshape(-1)
    rem = n % _LANES
    if rem == 0:
        out = _hardswish_slab(flat.reshape(-1, _LANES), tb, vmem_limit)
        return out.reshape(x.shape)

    # Ragged: Pallas on the 128-aligned prefix, plain jnp on the tiny tail.
    # Avoids the full-array pad + post-slice HBM passes of the old path.
    n_head = n - rem
    head_out = _hardswish_slab(flat[:n_head].reshape(-1, _LANES), tb, vmem_limit)
    tail_out = _hardswish_jnp(flat[n_head:])
    return jnp.concatenate([head_out.reshape(-1), tail_out]).reshape(x.shape)


def hardswish_ref(x: jax.Array) -> jax.Array:
    return x * jnp.clip(x + 3.0, 0.0, 6.0) / 6.0


if __name__ == "__main__":
    key = jax.random.PRNGKey(0)
    k1, k2, k3, k4 = jax.random.split(key, 4)

    # 1) Small MobileNetV3-style NCHW activation -> jnp fallback path (by design).
    x_small = jax.random.normal(k1, (2, 4, 16, 16), dtype=jnp.float32) * 4.0
    y_small = hardswish(x_small)
    jax.block_until_ready(y_small)
    assert y_small.shape == x_small.shape and y_small.dtype == x_small.dtype
    assert jnp.allclose(y_small, hardswish_ref(x_small), atol=1e-6, rtol=1e-5)

    # 2) Larger lane-aligned activation -> Pallas kernel path (multi-step grid).
    x_big = jax.random.normal(k2, (4, 64, 56, 56), dtype=jnp.float32) * 4.0
    y_big = hardswish(x_big)
    jax.block_until_ready(y_big)
    assert jnp.allclose(y_big, hardswish_ref(x_big), atol=1e-6, rtol=1e-5)

    # 3) Ragged element count (n % 128 != 0) -> Pallas prefix + jnp tail,
    #    exercises the masked partial last block.
    x_rag = jax.random.normal(k3, (1, 3, 331, 331), dtype=jnp.float32) * 4.0
    y_rag = hardswish(x_rag)
    jax.block_until_ready(y_rag)
    assert jnp.allclose(y_rag, hardswish_ref(x_rag), atol=1e-6, rtol=1e-5)

    # 4) bf16 input -> f32 compute inside the kernel, cast on store.
    x_bf = (jax.random.normal(k4, (4, 64, 56, 56), dtype=jnp.float32) * 4.0).astype(jnp.bfloat16)
    y_bf = hardswish(x_bf)
    jax.block_until_ready(y_bf)
    ref_bf = hardswish_ref(x_bf.astype(jnp.float32))
    assert y_bf.dtype == jnp.bfloat16
    assert jnp.allclose(y_bf.astype(jnp.float32), ref_bf, atol=0.08, rtol=0.05)

    print("KERNEL_OK")
</pallas_src>

<mosaic_0001>
module attributes {stable_mosaic.version = 11 : i64} {
  func.func @_hardswish_kernel(%arg0: i32, %arg1: memref<1568x128xf32, #tpu.memory_space<vmem>>, %arg2: memref<1568x128xf32, #tpu.memory_space<vmem>>) attributes {dimension_semantics = [#tpu.dimension_semantics<parallel>], iteration_bounds = array<i64: 4>, scalar_prefetch = 0 : i64, scratch_operands = 0 : i64, tpu.core_type = #tpu.core_type<tc>, window_params = [{transform_indices = @transform_0, window_bounds = array<i64: 1568, 128>}, {transform_indices = @transform_1, window_bounds = array<i64: 1568, 128>}]} {
    %c0 = arith.constant 0 : index
    %c0_0 = arith.constant 0 : index
    %0 = vector.load %arg1[%c0, %c0_0] : memref<1568x128xf32, #tpu.memory_space<vmem>>, vector<1568x128xf32>
    %cst = arith.constant 3.000000e+00 : f32
    %1 = vector.broadcast %cst : f32 to vector<1568x128xf32>
    %2 = arith.addf %0, %1 : vector<1568x128xf32>
    %cst_1 = arith.constant 0.000000e+00 : f32
    %cst_2 = arith.constant 6.000000e+00 : f32
    %3 = vector.broadcast %cst_1 : f32 to vector<1568x128xf32>
    %4 = arith.maximumf %3, %2 : vector<1568x128xf32>
    %5 = vector.broadcast %cst_2 : f32 to vector<1568x128xf32>
    %6 = arith.minimumf %5, %4 : vector<1568x128xf32>
    %7 = arith.mulf %0, %6 : vector<1568x128xf32>
    %cst_3 = arith.constant 0.166666672 : f32
    %8 = vector.broadcast %cst_3 : f32 to vector<1568x128xf32>
    %9 = arith.mulf %7, %8 : vector<1568x128xf32>
    %c0_4 = arith.constant 0 : index
    %c0_5 = arith.constant 0 : index
    %10 = vector.load %arg2[%c0_4, %c0_5] : memref<1568x128xf32, #tpu.memory_space<vmem>>, vector<1568x128xf32>
    tpu.vector_store %arg2[%c0_4, %c0_5], %9 {strides = array<i32>} : memref<1568x128xf32, #tpu.memory_space<vmem>>, vector<1568x128xf32>,
    return
  }
  func.func @transform_0(%arg0: i32) -> (i32, i32) {
    %c0_i32 = arith.constant 0 : i32
    %c0_i32_0 = arith.constant 0 : i32
    return %arg0, %c0_i32 : i32, i32
  }
  func.func @transform_1(%arg0: i32) -> (i32, i32) {
    %c0_i32 = arith.constant 0 : i32
    %c0_i32_0 = arith.constant 0 : i32
    return %arg0, %c0_i32 : i32, i32
  }
}

</mosaic_0001>

<llo_original>
// kernel: tpu_custom_call.1
$region0: #{tpu_custom_call.1}
  #allocation0 [shape = 'u32[]', space=smem, size = 0x4, offset = 0x4, fixed_abs, tag = 'smem constant byte address 0x4 - core index']
  #allocation1 [shape = 'u32[144,128]{1,0:T(1,128)}', space=vmem, size = 0x12000, scoped, tag = 'internal scratch']
  %s0 = inlined_call_operand.hbm [shape: f32[6272,128], index: 0, kind: input, shape index: {}, may-alias: {0,1}]
  %s1 = inlined_call_operand.hbm [shape: f32[6272,128], index: 1, kind: output, shape index: {}, may-alias: {0,1}]
  %s2 = sld [smem:[#allocation0]]
  $region41: #{tpu_custom_call.1} parent=0
    _
  %s4 = ssub.s32 1, %s2
  %s5 = scalar_select 0, %s4, %s2
  $region1: #{tpu_custom_call.1} parent=0
    #allocation2 [shape = 'u8[1605632]{0}', space=vmem, size = 0x188000, scoped, tag = 'input window, operand 0']
    #allocation3 [shape = 's32[2]{0}', space=sflag, size = 0x8, scoped, tag = 'scoped memory for tpu_custom_call.1']
    #allocation4 [shape = 's32[2]{0}', space=sflag, size = 0x8, scoped, tag = 'scoped memory for tpu_custom_call.1']
    #allocation5 [shape = 'u8[1605632]{0}', space=vmem, size = 0x188000, scoped, tag = 'output window, operand 0']
    %6 = vsyncpa [#allocation3], 0
    %s7 = scalar_lea.sflag [#allocation3], 1
    %8 = vsyncpa %s7, 0
    %9 = vsyncpa [#allocation4], 0
    %s10 = scalar_lea.sflag [#allocation4], 1
    %11 = vsyncpa %s10, 0
    loop: start=0, step=1, limit=6
    $region2: #{tpu_custom_call.1} parent=1 // loop_pre_header
      _
    $region3: #{tpu_custom_call.1} parent=1 // loop_header
      %s13 = sphi 0, %s17
      %p14 = scmp.ge.s32.totalorder %s13, 6
      %s23 = sphi 0, %s25
      %s26 = sphi 0, %s23
      %s27 = sphi 0, %s26
      %s43 = sphi 0, %s27
      %s49 = sphi 0, %s51
      %s52 = sphi 0, %s49
      %s53 = sphi 0, %s52
      %s69 = sphi 0, %s53
    $region4: #{tpu_custom_call.1} parent=1 // loop_header_branch
      %16 = sbr.rel (%p14) target = $region8
    $region5: #{tpu_custom_call.1} parent=1 // loop_body
      %s18 = ssub.s32 %s13, 1
      %s19 = ssub.s32 %s13, 2
      %s20 = sadd.s32 %s13, 1
      %s21 = ssub.s32 %s13, %s20
      %p22 = scmp.eq.s32.totalorder %s21, 0
      %s24 = sadd.s32 %s23, 1
      %s25 = scalar_select %p22, %s23, %s24
      %p28 = pneg %p22
      %p29 = scmp.eq.s32.totalorder %s13, 3
      %p30 = por %p28, %p29
      %p31 = scmp.ne.s32.totalorder %s23, %s26
      %p32 = scmp.eq.s32.totalorder %s13, 0
      %p33 = por %p31, %p32
      %p34 = scmp.ne.s32.totalorder %s23, %s26
      %p35 = scmp.eq.s32.totalorder %s18, 3
      %p36 = por %p34, %p35
      %p37 = scmp.ne.s32.totalorder %s26, %s27
      %p38 = scmp.eq.s32.totalorder %s18, 0
      %p39 = por %p37, %p38
      %p40 = scmp.ne.s32.totalorder %s26, %s27
      %p41 = scmp.eq.s32.totalorder %s19, 3
      %p42 = por %p40, %p41
      %p44 = scmp.ne.s32.totalorder %s27, %s43
      %p45 = scmp.eq.s32.totalorder %s19, 0
      %p46 = por %p44, %p45
      %s47 = ssub.s32 %s13, %s20
      %p48 = scmp.eq.s32.totalorder %s47, 0
      %s50 = sadd.s32 %s49, 1
      %s51 = scalar_select %p48, %s49, %s50
      %p54 = pneg %p48
      %p55 = scmp.eq.s32.totalorder %s13, 3
      %p56 = por %p54, %p55
      %p57 = scmp.ne.s32.totalorder %s49, %s52
      %p58 = scmp.eq.s32.totalorder %s13, 0
      %p59 = por %p57, %p58
      %p60 = scmp.ne.s32.totalorder %s49, %s52
      %p61 = scmp.eq.s32.totalorder %s18, 3
      %p62 = por %p60, %p61
      %p63 = scmp.ne.s32.totalorder %s52, %s53
      %p64 = scmp.eq.s32.totalorder %s18, 0
      %p65 = por %p63, %p64
      %p66 = scmp.ne.s32.totalorder %s52, %s53
      %p67 = scmp.eq.s32.totalorder %s19, 3
      %p68 = por %p66, %p67
      %p70 = scmp.ne.s32.totalorder %s53, %s69
      %p71 = scmp.eq.s32.totalorder %s19, 0
      %p72 = por %p70, %p71
      %p73 = scmp.le.s32.totalorder 1, %s13
      %p74 = scmp.lt.s32.totalorder %s13, 5
      %p75 = pnand %p73, %p74
      %p76 = pneg %p75
      // Predicated region
      $region9: #{tpu_custom_call.1} parent=5 // pred_check
        _
      $region10: #{tpu_custom_call.1} parent=5 // pred_check_branch
        %78 = sbr.rel (%p75) target = $region12
      $region11: #{tpu_custom_call.1} parent=5 // pred_region
        %s79 = ssub.s32 %s13, 1
      $region12: #{tpu_custom_call.1} parent=5 // pred_fallthru
        _
      %p80 = scmp.lt.s32.totalorder %s13, 4
      // Predicated region
      $region13: #{tpu_custom_call.1} parent=5 // pred_check
        %p81 = pneg %p80
      $region14: #{tpu_custom_call.1} parent=5 // pred_check_branch
        %83 = sbr.rel (%p81) target = $region16
      $region15: #{tpu_custom_call.1} parent=5 // pred_region
        // Predicated region
        $region17: #{tpu_custom_call.1} parent=15 // pred_check
          %p84 = pneg %p33
        $region18: #{tpu_custom_call.1} parent=15 // pred_check_branch
          %86 = sbr.rel (%p84) target = $region20
        $region19: #{tpu_custom_call.1} parent=15 // pred_region
          %s87 = sand.u32 %s23, 1
          %s88 = scalar_lea.sflag [#allocation3], %s87
          %s89 = sand.u32 %s23, 1
          %s90 = smul.addr %s89, 1568
          %s91 = scalar_lea.vmem [#allocation2], %s90
          %s92 = smul.u32 196, %s13
          %s94 = ssub.s32 25088, 25088
          %95 = vsyncadd %s88, %s94
          %s96 = smul.addr %s92, 128
          %s97 = scalar_lea.hbm %s0, %s96
          %s98 = sshll.u32 %s91, 4
          %s99 = int_to_ptr.vmem [resolvable:$true] %s98
          %104 = dma.hbm_to_vmem [thread:$0]  %s97, 25088, %s99, %s88, 128, 128, 8
        $region20: #{tpu_custom_call.1} parent=15 // pred_fallthru
          _
      $region16: #{tpu_custom_call.1} parent=5 // pred_fallthru
        _
      %p105 = scmp.le.s32.totalorder 1, %s13
      %p106 = scmp.lt.s32.totalorder %s13, 5
      %p107 = pnand %p105, %p106
      %p108 = pneg %p107
      // Predicated region
      $region21: #{tpu_custom_call.1} parent=5 // pred_check
        _
      $region22: #{tpu_custom_call.1} parent=5 // pred_check_branch
        %110 = sbr.rel (%p107) target = $region24
      $region23: #{tpu_custom_call.1} parent=5 // pred_region
        %s111 = ssub.s32 %s13, 1
        %s112 = sand.u32 %s26, 1
        %s113 = scalar_lea.sflag [#allocation3], %s112
        %s114 = sand.u32 %s26, 1
        %s115 = smul.addr %s114, 1568
        %s116 = scalar_lea.vmem [#allocation2], %s115
        // Predicated region
        $region25: #{tpu_custom_call.1} parent=23 // pred_check
          %p117 = pneg %p39
        $region26: #{tpu_custom_call.1} parent=23 // pred_check_branch
          %119 = sbr.rel (%p117) target = $region28
        $region27: #{tpu_custom_call.1} parent=23 // pred_region
          %120 = dma.done %s113, 25088
        $region28: #{tpu_custom_call.1} parent=23 // pred_fallthru
          _
        %s121 = sand.u32 %s26, 1
        %s122 = scalar_lea.sflag [#allocation3], %s121
        %s123 = sand.u32 %s26, 1
        %s124 = smul.addr %s123, 1568
        %s125 = scalar_lea.vmem [#allocation2], %s124
        %p126 = pneg %p39
        %p127 = pneg %p36
        %p128 = pneg %p65
        %p129 = pneg %p62
        %s130 = sand.u32 %s52, 1
        %s131 = scalar_lea.sflag [#allocation4], %s130
        %s132 = sand.u32 %s52, 1
        %s133 = smul.addr %s132, 1568
        %s134 = scalar_lea.vmem [#allocation5], %s133
        %s135 = smul.u32 196, %s18
        %s136 = smul.u32 196, %s18
        %v137 = vld [vmem:[%s116] sm:$0xff]
        %v138 = vld [vmem:[%s116 + $0x8] sm:$0xff]
        %v139 = vld [vmem:[%s116 + $0x10] sm:$0xff]
        %v140 = vld [vmem:[%s116 + $0x18] sm:$0xff]
        %v141 = vld [vmem:[%s116 + $0x20] sm:$0xff]
        %v142 = vld [vmem:[%s116 + $0x28] sm:$0xff]
        %v143 = vld [vmem:[%s116 + $0x30] sm:$0xff]
        %v144 = vld [vmem:[%s116 + $0x38] sm:$0xff]
        %v145 = vld [vmem:[%s116 + $0x40] sm:$0xff]
        %v146 = vld [vmem:[%s116 + $0x48] sm:$0xff]
        %v147 = vld [vmem:[%s116 + $0x50] sm:$0xff]
        %v148 = vld [vmem:[%s116 + $0x58] sm:$0xff]
        %v149 = vld [vmem:[%s116 + $0x60] sm:$0xff]
        %v150 = vld [vmem:[%s116 + $0x68] sm:$0xff]
        %v151 = vld [vmem:[%s116 + $0x70] sm:$0xff]
        %v152 = vld [vmem:[%s116 + $0x78] sm:$0xff]
        %v153 = vld [vmem:[%s116 + $0x80] sm:$0xff]
        %v154 = vld [vmem:[%s116 + $0x88] sm:$0xff]
        %v155 = vld [vmem:[%s116 + $0x90] sm:$0xff]
        %v156 = vld [vmem:[%s116 + $0x98] sm:$0xff]
        %v157 = vld [vmem:[%s116 + $0xa0] sm:$0xff]
        %v158 = vld [vmem:[%s116 + $0xa8] sm:$0xff]
        %v159 = vld [vmem:[%s116 + $0xb0] sm:$0xff]
        %v160 = vld [vmem:[%s116 + $0xb8] sm:$0xff]
        %v161 = vld [vmem:[%s116 + $0xc0] sm:$0xff]
        %v162 = vld [vmem:[%s116 + $0xc8] sm:$0xff]
        %v163 = vld [vmem:[%s116 + $0xd0] sm:$0xff]
        %v164 = vld [vmem:[%s116 + $0xd8] sm:$0xff]
        %v165 = vld [vmem:[%s116 + $0xe0] sm:$0xff]
        %v166 = vld [vmem:[%s116 + $0xe8] sm:$0xff]
        %v167 = vld [vmem:[%s116 + $0xf0] sm:$0xff]
        %v168 = vld [vmem:[%s116 + $0xf8] sm:$0xff]
        %v169 = vld [vmem:[%s116 + $0x100] sm:$0xff]
        %v170 = vld [vmem:[%s116 + $0x108] sm:$0xff]
        %v171 = vld [vmem:[%s116 + $0x110] sm:$0xff]
        %v172 = vld [vmem:[%s116 + $0x118] sm:$0xff]
        %v173 = vld [vmem:[%s116 + $0x120] sm:$0xff]
        %v174 = vld [vmem:[%s116 + $0x128] sm:$0xff]
        %v175 = vld [vmem:[%s116 + $0x130] sm:$0xff]
        %v176 = vld [vmem:[%s116 + $0x138] sm:$0xff]
        %v177 = vld [vmem:[%s116 + $0x140] sm:$0xff]
        %v178 = vld [vmem:[%s116 + $0x148] sm:$0xff]
        %v179 = vld [vmem:[%s116 + $0x150] sm:$0xff]
        %v180 = vld [vmem:[%s116 + $0x158] sm:$0xff]
        %v181 = vld [vmem:[%s116 + $0x160] sm:$0xff]
        %v182 = vld [vmem:[%s116 + $0x168] sm:$0xff]
        %v183 = vld [vmem:[%s116 + $0x170] sm:$0xff]
        %v184 = vld [vmem:[%s116 + $0x178] sm:$0xff]
        %v185 = vld [vmem:[%s116 + $0x180] sm:$0xff]
        %v186 = vld [vmem:[%s116 + $0x188] sm:$0xff]
        %v187 = vld [vmem:[%s116 + $0x190] sm:$0xff]
        %v188 = vld [vmem:[%s116 + $0x198] sm:$0xff]
        %v189 = vld [vmem:[%s116 + $0x1a0] sm:$0xff]
        %v190 = vld [vmem:[%s116 + $0x1a8] sm:$0xff]
        %v191 = vld [vmem:[%s116 + $0x1b0] sm:$0xff]
        %v192 = vld [vmem:[%s116 + $0x1b8] sm:$0xff]
        %v193 = vld [vmem:[%s116 + $0x1c0] sm:$0xff]
        %v194 = vld [vmem:[%s116 + $0x1c8] sm:$0xff]
        %v195 = vld [vmem:[%s116 + $0x1d0] sm:$0xff]
        %v196 = vld [vmem:[%s116 + $0x1d8] sm:$0xff]
        %v197 = vld [vmem:[%s116 + $0x1e0] sm:$0xff]
        %v198 = vld [vmem:[%s116 + $0x1e8] sm:$0xff]
        %v199 = vld [vmem:[%s116 + $0x1f0] sm:$0xff]
        %v200 = vld [vmem:[%s116 + $0x1f8] sm:$0xff]
        %v201 = vld [vmem:[%s116 + $0x200] sm:$0xff]
        %v202 = vld [vmem:[%s116 + $0x208] sm:$0xff]
        %v203 = vld [vmem:[%s116 + $0x210] sm:$0xff]
        %v204 = vld [vmem:[%s116 + $0x218] sm:$0xff]
        %v205 = vld [vmem:[%s116 + $0x220] sm:$0xff]
        %v206 = vld [vmem:[%s116 + $0x228] sm:$0xff]
        %v207 = vld [vmem:[%s116 + $0x230] sm:$0xff]
        %v208 = vld [vmem:[%s116 + $0x238] sm:$0xff]
        %v209 = vld [vmem:[%s116 + $0x240] sm:$0xff]
        %v210 = vld [vmem:[%s116 + $0x248] sm:$0xff]
        %v211 = vld [vmem:[%s116 + $0x250] sm:$0xff]
        %v212 = vld [vmem:[%s116 + $0x258] sm:$0xff]
        %v213 = vld [vmem:[%s116 + $0x260] sm:$0xff]
        %v214 = vld [vmem:[%s116 + $0x268] sm:$0xff]
        %v215 = vld [vmem:[%s116 + $0x270] sm:$0xff]
        %v216 = vld [vmem:[%s116 + $0x278] sm:$0xff]
        %v217 = vld [vmem:[%s116 + $0x280] sm:$0xff]
        %v218 = vld [vmem:[%s116 + $0x288] sm:$0xff]
        %v219 = vld [vmem:[%s116 + $0x290] sm:$0xff]
        %v220 = vld [vmem:[%s116 + $0x298] sm:$0xff]
        %v221 = vld [vmem:[%s116 + $0x2a0] sm:$0xff]
        %v222 = vld [vmem:[%s116 + $0x2a8] sm:$0xff]
        %v223 = vld [vmem:[%s116 + $0x2b0] sm:$0xff]
        %v224 = vld [vmem:[%s116 + $0x2b8] sm:$0xff]
        %v225 = vld [vmem:[%s116 + $0x2c0] sm:$0xff]
        %v226 = vld [vmem:[%s116 + $0x2c8] sm:$0xff]
        %v227 = vld [vmem:[%s116 + $0x2d0] sm:$0xff]
        %v228 = vld [vmem:[%s116 + $0x2d8] sm:$0xff]
        %v229 = vld [vmem:[%s116 + $0x2e0] sm:$0xff]
        %v230 = vld [vmem:[%s116 + $0x2e8] sm:$0xff]
        %v231 = vld [vmem:[%s116 + $0x2f0] sm:$0xff]
        %v232 = vld [vmem:[%s116 + $0x2f8] sm:$0xff]
        %v233 = vld [vmem:[%s116 + $0x300] sm:$0xff]
        %v234 = vld [vmem:[%s116 + $0x308] sm:$0xff]
        %v235 = vld [vmem:[%s116 + $0x310] sm:$0xff]
        %v236 = vld [vmem:[%s116 + $0x318] sm:$0xff]
        %v237 = vld [vmem:[%s116 + $0x320] sm:$0xff]
        %v238 = vld [vmem:[%s116 + $0x328] sm:$0xff]
        %v239 = vld [vmem:[%s116 + $0x330] sm:$0xff]
        %v240 = vld [vmem:[%s116 + $0x338] sm:$0xff]
        %v241 = vld [vmem:[%s116 + $0x340] sm:$0xff]
        %v242 = vld [vmem:[%s116 + $0x348] sm:$0xff]
        %v243 = vld [vmem:[%s116 + $0x350] sm:$0xff]
        %v244 = vld [vmem:[%s116 + $0x358] sm:$0xff]
        %v245 = vld [vmem:[%s116 + $0x360] sm:$0xff]
        %v246 = vld [vmem:[%s116 + $0x368] sm:$0xff]
        %v247 = vld [vmem:[%s116 + $0x370] sm:$0xff]
        %v248 = vld [vmem:[%s116 + $0x378] sm:$0xff]
        %v249 = vld [vmem:[%s116 + $0x380] sm:$0xff]
        %v250 = vld [vmem:[%s116 + $0x388] sm:$0xff]
        %v251 = vld [vmem:[%s116 + $0x390] sm:$0xff]
        %v252 = vld [vmem:[%s116 + $0x398] sm:$0xff]
        %v253 = vld [vmem:[%s116 + $0x3a0] sm:$0xff]
        %v254 = vld [vmem:[%s116 + $0x3a8] sm:$0xff]
        %v255 = vld [vmem:[%s116 + $0x3b0] sm:$0xff]
        %v256 = vld [vmem:[%s116 + $0x3b8] sm:$0xff]
        %v257 = vld [vmem:[%s116 + $0x3c0] sm:$0xff]
        %v258 = vld [vmem:[%s116 + $0x3c8] sm:$0xff]
        %v259 = vld [vmem:[%s116 + $0x3d0] sm:$0xff]
        %v260 = vld [vmem:[%s116 + $0x3d8] sm:$0xff]
        %v261 = vld [vmem:[%s116 + $0x3e0] sm:$0xff]
        %v262 = vld [vmem:[%s116 + $0x3e8] sm:$0xff]
        %v263 = vld [vmem:[%s116 + $0x3f0] sm:$0xff]
        %v264 = vld [vmem:[%s116 + $0x3f8] sm:$0xff]
        %v265 = vld [vmem:[%s116 + $0x400] sm:$0xff]
        %v266 = vld [vmem:[%s116 + $0x408] sm:$0xff]
        %v267 = vld [vmem:[%s116 + $0x410] sm:$0xff]
        %v268 = vld [vmem:[%s116 + $0x418] sm:$0xff]
        %v269 = vld [vmem:[%s116 + $0x420] sm:$0xff]
        %v270 = vld [vmem:[%s116 + $0x428] sm:$0xff]
        %v271 = vld [vmem:[%s116 + $0x430] sm:$0xff]
        %v272 = vld [vmem:[%s116 + $0x438] sm:$0xff]
        %v273 = vld [vmem:[%s116 + $0x440] sm:$0xff]
        %v274 = vld [vmem:[%s116 + $0x448] sm:$0xff]
        %v275 = vld [vmem:[%s116 + $0x450] sm:$0xff]
        %v276 = vld [vmem:[%s116 + $0x458] sm:$0xff]
        %v277 = vld [vmem:[%s116 + $0x460] sm:$0xff]
        %v278 = vld [vmem:[%s116 + $0x468] sm:$0xff]
        %v279 = vld [vmem:[%s116 + $0x470] sm:$0xff]
        %v280 = vld [vmem:[%s116 + $0x478] sm:$0xff]
        %v281 = vld [vmem:[%s116 + $0x480] sm:$0xff]
        %v282 = vld [vmem:[%s116 + $0x488] sm:$0xff]
        %v283 = vld [vmem:[%s116 + $0x490] sm:$0xff]
        %v284 = vld [vmem:[%s116 + $0x498] sm:$0xff]
        %v285 = vld [vmem:[%s116 + $0x4a0] sm:$0xff]
        %v286 = vld [vmem:[%s116 + $0x4a8] sm:$0xff]
        %v287 = vld [vmem:[%s116 + $0x4b0] sm:$0xff]
        %v288 = vld [vmem:[%s116 + $0x4b8] sm:$0xff]
        %v289 = vld [vmem:[%s116 + $0x4c0] sm:$0xff]
        %v290 = vld [vmem:[%s116 + $0x4c8] sm:$0xff]
        %v291 = vld [vmem:[%s116 + $0x4d0] sm:$0xff]
        %v292 = vld [vmem:[%s116 + $0x4d8] sm:$0xff]
        %v293 = vld [vmem:[%s116 + $0x4e0] sm:$0xff]
        %v294 = vld [vmem:[%s116 + $0x4e8] sm:$0xff]
        %v295 = vld [vmem:[%s116 + $0x4f0] sm:$0xff]
        %v296 = vld [vmem:[%s116 + $0x4f8] sm:$0xff]
        %v297 = vld [vmem:[%s116 + $0x500] sm:$0xff]
        %v298 = vld [vmem:[%s116 + $0x508] sm:$0xff]
        %v299 = vld [vmem:[%s116 + $0x510] sm:$0xff]
        %v300 = vld [vmem:[%s116 + $0x518] sm:$0xff]
        %v301 = vld [vmem:[%s116 + $0x520] sm:$0xff]
        %v302 = vld [vmem:[%s116 + $0x528] sm:$0xff]
        %v303 = vld [vmem:[%s116 + $0x530] sm:$0xff]
        %v304 = vld [vmem:[%s116 + $0x538] sm:$0xff]
        %v305 = vld [vmem:[%s116 + $0x540] sm:$0xff]
        %v306 = vld [vmem:[%s116 + $0x548] sm:$0xff]
        %v307 = vld [vmem:[%s116 + $0x550] sm:$0xff]
        %v308 = vld [vmem:[%s116 + $0x558] sm:$0xff]
        %v309 = vld [vmem:[%s116 + $0x560] sm:$0xff]
        %v310 = vld [vmem:[%s116 + $0x568] sm:$0xff]
        %v311 = vld [vmem:[%s116 + $0x570] sm:$0xff]
        %v312 = vld [vmem:[%s116 + $0x578] sm:$0xff]
        %v313 = vld [vmem:[%s116 + $0x580] sm:$0xff]
        %v314 = vld [vmem:[%s116 + $0x588] sm:$0xff]
        %v315 = vld [vmem:[%s116 + $0x590] sm:$0xff]
        %v316 = vld [vmem:[%s116 + $0x598] sm:$0xff]
        %v317 = vld [vmem:[%s116 + $0x5a0] sm:$0xff]
        %v318 = vld [vmem:[%s116 + $0x5a8] sm:$0xff]
        %v319 = vld [vmem:[%s116 + $0x5b0] sm:$0xff]
        %v320 = vld [vmem:[%s116 + $0x5b8] sm:$0xff]
        %v321 = vld [vmem:[%s116 + $0x5c0] sm:$0xff]
        %v322 = vld [vmem:[%s116 + $0x5c8] sm:$0xff]
        %v323 = vld [vmem:[%s116 + $0x5d0] sm:$0xff]
        %v324 = vld [vmem:[%s116 + $0x5d8] sm:$0xff]
        %v325 = vld [vmem:[%s116 + $0x5e0] sm:$0xff]
        %v326 = vld [vmem:[%s116 + $0x5e8] sm:$0xff]
        %v327 = vld [vmem:[%s116 + $0x5f0] sm:$0xff]
        %v328 = vld [vmem:[%s116 + $0x5f8] sm:$0xff]
        %v329 = vld [vmem:[%s116 + $0x600] sm:$0xff]
        %v330 = vld [vmem:[%s116 + $0x608] sm:$0xff]
        %v331 = vld [vmem:[%s116 + $0x610] sm:$0xff]
        %v332 = vld [vmem:[%s116 + $0x618] sm:$0xff]
        %v333 = vadd.f32 %v137, 3.0
        %v334 = vadd.f32 %v138, 3.0
        %v335 = vadd.f32 %v139, 3.0
        %v336 = vadd.f32 %v140, 3.0
        %v337 = vadd.f32 %v141, 3.0
        %v338 = vadd.f32 %v142, 3.0
        %v339 = vadd.f32 %v143, 3.0
        %v340 = vadd.f32 %v144, 3.0
        %v341 = vadd.f32 %v145, 3.0
        %v342 = vadd.f32 %v146, 3.0
        %v343 = vadd.f32 %v147, 3.0
        %v344 = vadd.f32 %v148, 3.0
        %v345 = vadd.f32 %v149, 3.0
        %v346 = vadd.f32 %v150, 3.0
        %v347 = vadd.f32 %v151, 3.0
        %v348 = vadd.f32 %v152, 3.0
        %v349 = vadd.f32 %v153, 3.0
        %v350 = vadd.f32 %v154, 3.0
        %v351 = vadd.f32 %v155, 3.0
        %v352 = vadd.f32 %v156, 3.0
        %v353 = vadd.f32 %v157, 3.0
        %v354 = vadd.f32 %v158, 3.0
        %v355 = vadd.f32 %v159, 3.0
        %v356 = vadd.f32 %v160, 3.0
        %v357 = vadd.f32 %v161, 3.0
        %v358 = vadd.f32 %v162, 3.0
        %v359 = vadd.f32 %v163, 3.0
        %v360 = vadd.f32 %v164, 3.0
        %v361 = vadd.f32 %v165, 3.0
        %v362 = vadd.f32 %v166, 3.0
        %v363 = vadd.f32 %v167, 3.0
        %v364 = vadd.f32 %v168, 3.0
        %v365 = vadd.f32 %v169, 3.0
        %v366 = vadd.f32 %v170, 3.0
        %v367 = vadd.f32 %v171, 3.0
        %v368 = vadd.f32 %v172, 3.0
        %v369 = vadd.f32 %v173, 3.0
        %v370 = vadd.f32 %v174, 3.0
        %v371 = vadd.f32 %v175, 3.0
        %v372 = vadd.f32 %v176, 3.0
        %v373 = vadd.f32 %v177, 3.0
        %v374 = vadd.f32 %v178, 3.0
        %v375 = vadd.f32 %v179, 3.0
        %v376 = vadd.f32 %v180, 3.0
        %v377 = vadd.f32 %v181, 3.0
        %v378 = vadd.f32 %v182, 3.0
        %v379 = vadd.f32 %v183, 3.0
        %v380 = vadd.f32 %v184, 3.0
        %v381 = vadd.f32 %v185, 3.0
        %v382 = vadd.f32 %v186, 3.0
        %v383 = vadd.f32 %v187, 3.0
        %v384 = vadd.f32 %v188, 3.0
        %v385 = vadd.f32 %v189, 3.0
        %v386 = vadd.f32 %v190, 3.0
        %v387 = vadd.f32 %v191, 3.0
        %v388 = vadd.f32 %v192, 3.0
        %v389 = vadd.f32 %v193, 3.0
        %v390 = vadd.f32 %v194, 3.0
        %v391 = vadd.f32 %v195, 3.0
        %v392 = vadd.f32 %v196, 3.0
        %v393 = vadd.f32 %v197, 3.0
        %v394 = vadd.f32 %v198, 3.0
        %v395 = vadd.f32 %v199, 3.0
        %v396 = vadd.f32 %v200, 3.0
        %v397 = vadd.f32 %v201, 3.0
        %v398 = vadd.f32 %v202, 3.0
        %v399 = vadd.f32 %v203, 3.0
        %v400 = vadd.f32 %v204, 3.0
        %v401 = vadd.f32 %v205, 3.0
        %v402 = vadd.f32 %v206, 3.0
        %v403 = vadd.f32 %v207, 3.0
        %v404 = vadd.f32 %v208, 3.0
        %v405 = vadd.f32 %v209, 3.0
        %v406 = vadd.f32 %v210, 3.0
        %v407 = vadd.f32 %v211, 3.0
        %v408 = vadd.f32 %v212, 3.0
        %v409 = vadd.f32 %v213, 3.0
        %v410 = vadd.f32 %v214, 3.0
        %v411 = vadd.f32 %v215, 3.0
        %v412 = vadd.f32 %v216, 3.0
        %v413 = vadd.f32 %v217, 3.0
        %v414 = vadd.f32 %v218, 3.0
        %v415 = vadd.f32 %v219, 3.0
        %v416 = vadd.f32 %v220, 3.0
        %v417 = vadd.f32 %v221, 3.0
        %v418 = vadd.f32 %v222, 3.0
        %v419 = vadd.f32 %v223, 3.0
        %v420 = vadd.f32 %v224, 3.0
        %v421 = vadd.f32 %v225, 3.0
        %v422 = vadd.f32 %v226, 3.0
        %v423 = vadd.f32 %v227, 3.0
        %v424 = vadd.f32 %v228, 3.0
        %v425 = vadd.f32 %v229, 3.0
        %v426 = vadd.f32 %v230, 3.0
        %v427 = vadd.f32 %v231, 3.0
        %v428 = vadd.f32 %v232, 3.0
        %v429 = vadd.f32 %v233, 3.0
        %v430 = vadd.f32 %v234, 3.0
        %v431 = vadd.f32 %v235, 3.0
        %v432 = vadd.f32 %v236, 3.0
        %v433 = vadd.f32 %v237, 3.0
        %v434 = vadd.f32 %v238, 3.0
        %v435 = vadd.f32 %v239, 3.0
        %v436 = vadd.f32 %v240, 3.0
        %v437 = vadd.f32 %v241, 3.0
        %v438 = vadd.f32 %v242, 3.0
        %v439 = vadd.f32 %v243, 3.0
        %v440 = vadd.f32 %v244, 3.0
        %v441 = vadd.f32 %v245, 3.0
        %v442 = vadd.f32 %v246, 3.0
        %v443 = vadd.f32 %v247, 3.0
        %v444 = vadd.f32 %v248, 3.0
        %v445 = vadd.f32 %v249, 3.0
        %v446 = vadd.f32 %v250, 3.0
        %v447 = vadd.f32 %v251, 3.0
        %v448 = vadd.f32 %v252, 3.0
        %v449 = vadd.f32 %v253, 3.0
        %v450 = vadd.f32 %v254, 3.0
        %v451 = vadd.f32 %v255, 3.0
        %v452 = vadd.f32 %v256, 3.0
        %v453 = vadd.f32 %v257, 3.0
        %v454 = vadd.f32 %v258, 3.0
        %v455 = vadd.f32 %v259, 3.0
        %v456 = vadd.f32 %v260, 3.0
        %v457 = vadd.f32 %v261, 3.0
        %v458 = vadd.f32 %v262, 3.0
        %v459 = vadd.f32 %v263, 3.0
        %v460 = vadd.f32 %v264, 3.0
        %v461 = vadd.f32 %v265, 3.0
        %v462 = vadd.f32 %v266, 3.0
        %v463 = vadd.f32 %v267, 3.0
        %v464 = vadd.f32 %v268, 3.0
        %v465 = vadd.f32 %v269, 3.0
        %v466 = vadd.f32 %v270, 3.0
        %v467 = vadd.f32 %v271, 3.0
        %v468 = vadd.f32 %v272, 3.0
        %v469 = vadd.f32 %v273, 3.0
        %v470 = vadd.f32 %v274, 3.0
        %v471 = vadd.f32 %v275, 3.0
        %v472 = vadd.f32 %v276, 3.0
        %v473 = vadd.f32 %v277, 3.0
        %v474 = vadd.f32 %v278, 3.0
        %v475 = vadd.f32 %v279, 3.0
        %v476 = vadd.f32 %v280, 3.0
        %v477 = vadd.f32 %v281, 3.0
        %v478 = vadd.f32 %v282, 3.0
        %v479 = vadd.f32 %v283, 3.0
        %v480 = vadd.f32 %v284, 3.0
        %v481 = vadd.f32 %v285, 3.0
        %v482 = vadd.f32 %v286, 3.0
        %v483 = vadd.f32 %v287, 3.0
        %v484 = vadd.f32 %v288, 3.0
        %v485 = vadd.f32 %v289, 3.0
        %v486 = vadd.f32 %v290, 3.0
        %v487 = vadd.f32 %v291, 3.0
        %v488 = vadd.f32 %v292, 3.0
        %v489 = vadd.f32 %v293, 3.0
        %v490 = vadd.f32 %v294, 3.0
        %v491 = vadd.f32 %v295, 3.0
        %v492 = vadd.f32 %v296, 3.0
        %v493 = vadd.f32 %v297, 3.0
        %v494 = vadd.f32 %v298, 3.0
        %v495 = vadd.f32 %v299, 3.0
        %v496 = vadd.f32 %v300, 3.0
        %v497 = vadd.f32 %v301, 3.0
        %v498 = vadd.f32 %v302, 3.0
        %v499 = vadd.f32 %v303, 3.0
        %v500 = vadd.f32 %v304, 3.0
        %v501 = vadd.f32 %v305, 3.0
        %v502 = vadd.f32 %v306, 3.0
        %v503 = vadd.f32 %v307, 3.0
        %v504 = vadd.f32 %v308, 3.0
        %v505 = vadd.f32 %v309, 3.0
        %v506 = vadd.f32 %v310, 3.0
        %v507 = vadd.f32 %v311, 3.0
        %v508 = vadd.f32 %v312, 3.0
        %v509 = vadd.f32 %v313, 3.0
        %v510 = vadd.f32 %v314, 3.0
        %v511 = vadd.f32 %v315, 3.0
        %v512 = vadd.f32 %v316, 3.0
        %v513 = vadd.f32 %v317, 3.0
        %v514 = vadd.f32 %v318, 3.0
        %v515 = vadd.f32 %v319, 3.0
        %v516 = vadd.f32 %v320, 3.0
        %v517 = vadd.f32 %v321, 3.0
        %v518 = vadd.f32 %v322, 3.0
        %v519 = vadd.f32 %v323, 3.0
        %v520 = vadd.f32 %v324, 3.0
        %v521 = vadd.f32 %v325, 3.0
        %v522 = vadd.f32 %v326, 3.0
        %v523 = vadd.f32 %v327, 3.0
        %v524 = vadd.f32 %v328, 3.0
        %v525 = vadd.f32 %v329, 3.0
        %v526 = vadd.f32 %v330, 3.0
        %v527 = vadd.f32 %v331, 3.0
        %v528 = vadd.f32 %v332, 3.0
        %v529 = vmax.f32 %v333, 0.0
        %v530 = vmax.f32 %v334, 0.0
        %v531 = vmax.f32 %v335, 0.0
        %v532 = vmax.f32 %v336, 0.0
        %v533 = vmax.f32 %v337, 0.0
        %v534 = vmax.f32 %v338, 0.0
        %v535 = vmax.f32 %v339, 0.0
        %v536 = vmax.f32 %v340, 0.0
        %v537 = vmax.f32 %v341, 0.0
        %v538 = vmax.f32 %v342, 0.0
        %v539 = vmax.f32 %v343, 0.0
        %v540 = vmax.f32 %v344, 0.0
        %v541 = vmax.f32 %v345, 0.0
        %v542 = vmax.f32 %v346, 0.0
        %v543 = vmax.f32 %v347, 0.0
        %v544 = vmax.f32 %v348, 0.0
        %v545 = vmax.f32 %v349, 0.0
        %v546 = vmax.f32 %v350, 0.0
        %v547 = vmax.f32 %v351, 0.0
        %v548 = vmax.f32 %v352, 0.0
        %v549 = vmax.f32 %v353, 0.0
        %v550 = vmax.f32 %v354, 0.0
        %v551 = vmax.f32 %v355, 0.0
        %v552 = vmax.f32 %v356, 0.0
        %v553 = vmax.f32 %v357, 0.0
        %v554 = vmax.f32 %v358, 0.0
        %v555 = vmax.f32 %v359, 0.0
        %v556 = vmax.f32 %v360, 0.0
        %v557 = vmax.f32 %v361, 0.0
        %v558 = vmax.f32 %v362, 0.0
        %v559 = vmax.f32 %v363, 0.0
        %v560 = vmax.f32 %v364, 0.0
        %v561 = vmax.f32 %v365, 0.0
        %v562 = vmax.f32 %v366, 0.0
        %v563 = vmax.f32 %v367, 0.0
        %v564 = vmax.f32 %v368, 0.0
        %v565 = vmax.f32 %v369, 0.0
        %v566 = vmax.f32 %v370, 0.0
        %v567 = vmax.f32 %v371, 0.0
        %v568 = vmax.f32 %v372, 0.0
        %v569 = vmax.f32 %v373, 0.0
        %v570 = vmax.f32 %v374, 0.0
        %v571 = vmax.f32 %v375, 0.0
        %v572 = vmax.f32 %v376, 0.0
        %v573 = vmax.f32 %v377, 0.0
        %v574 = vmax.f32 %v378, 0.0
        %v575 = vmax.f32 %v379, 0.0
        %v576 = vmax.f32 %v380, 0.0
        %v577 = vmax.f32 %v381, 0.0
        %v578 = vmax.f32 %v382, 0.0
        %v579 = vmax.f32 %v383, 0.0
        %v580 = vmax.f32 %v384, 0.0
        %v581 = vmax.f32 %v385, 0.0
        %v582 = vmax.f32 %v386, 0.0
        %v583 = vmax.f32 %v387, 0.0
        %v584 = vmax.f32 %v388, 0.0
        %v585 = vmax.f32 %v389, 0.0
        %v586 = vmax.f32 %v390, 0.0
        %v587 = vmax.f32 %v391, 0.0
        %v588 = vmax.f32 %v392, 0.0
        %v589 = vmax.f32 %v393, 0.0
        %v590 = vmax.f32 %v394, 0.0
        %v591 = vmax.f32 %v395, 0.0
        %v592 = vmax.f32 %v396, 0.0
        %v593 = vmax.f32 %v397, 0.0
        %v594 = vmax.f32 %v398, 0.0
        %v595 = vmax.f32 %v399, 0.0
        %v596 = vmax.f32 %v400, 0.0
        %v597 = vmax.f32 %v401, 0.0
        %v598 = vmax.f32 %v402, 0.0
        %v599 = vmax.f32 %v403, 0.0
        %v600 = vmax.f32 %v404, 0.0
        %v601 = vmax.f32 %v405, 0.0
        %v602 = vmax.f32 %v406, 0.0
        %v603 = vmax.f32 %v407, 0.0
        %v604 = vmax.f32 %v408, 0.0
        %v605 = vmax.f32 %v409, 0.0
        %v606 = vmax.f32 %v410, 0.0
        %v607 = vmax.f32 %v411, 0.0
        %v608 = vmax.f32 %v412, 0.0
        %v609 = vmax.f32 %v413, 0.0
        %v610 = vmax.f32 %v414, 0.0
        %v611 = vmax.f32 %v415, 0.0
        %v612 = vmax.f32 %v416, 0.0
        %v613 = vmax.f32 %v417, 0.0
        %v614 = vmax.f32 %v418, 0.0
        %v615 = vmax.f32 %v419, 0.0
        %v616 = vmax.f32 %v420, 0.0
        %v617 = vmax.f32 %v421, 0.0
        %v618 = vmax.f32 %v422, 0.0
        %v619 = vmax.f32 %v423, 0.0
        %v620 = vmax.f32 %v424, 0.0
        %v621 = vmax.f32 %v425, 0.0
        %v622 = vmax.f32 %v426, 0.0
        %v623 = vmax.f32 %v427, 0.0
        %v624 = vmax.f32 %v428, 0.0
        %v625 = vmax.f32 %v429, 0.0
        %v626 = vmax.f32 %v430, 0.0
        %v627 = vmax.f32 %v431, 0.0
        %v628 = vmax.f32 %v432, 0.0
        %v629 = vmax.f32 %v433, 0.0
        %v630 = vmax.f32 %v434, 0.0
        %v631 = vmax.f32 %v435, 0.0
        %v632 = vmax.f32 %v436, 0.0
        %v633 = vmax.f32 %v437, 0.0
        %v634 = vmax.f32 %v438, 0.0
        %v635 = vmax.f32 %v439, 0.0
        %v636 = vmax.f32 %v440, 0.0
        %v637 = vmax.f32 %v441, 0.0
        %v638 = vmax.f32 %v442, 0.0
        %v639 = vmax.f32 %v443, 0.0
        %v640 = vmax.f32 %v444, 0.0
        %v641 = vmax.f32 %v445, 0.0
        %v642 = vmax.f32 %v446, 0.0
        %v643 = vmax.f32 %v447, 0.0
        %v644 = vmax.f32 %v448, 0.0
        %v645 = vmax.f32 %v449, 0.0
        %v646 = vmax.f32 %v450, 0.0
        %v647 = vmax.f32 %v451, 0.0
        %v648 = vmax.f32 %v452, 0.0
        %v649 = vmax.f32 %v453, 0.0
        %v650 = vmax.f32 %v454, 0.0
        %v651 = vmax.f32 %v455, 0.0
        %v652 = vmax.f32 %v456, 0.0
        %v653 = vmax.f32 %v457, 0.0
        %v654 = vmax.f32 %v458, 0.0
        %v655 = vmax.f32 %v459, 0.0
        %v656 = vmax.f32 %v460, 0.0
        %v657 = vmax.f32 %v461, 0.0
        %v658 = vmax.f32 %v462, 0.0
        %v659 = vmax.f32 %v463, 0.0
        %v660 = vmax.f32 %v464, 0.0
        %v661 = vmax.f32 %v465, 0.0
        %v662 = vmax.f32 %v466, 0.0
        %v663 = vmax.f32 %v467, 0.0
        %v664 = vmax.f32 %v468, 0.0
        %v665 = vmax.f32 %v469, 0.0
        %v666 = vmax.f32 %v470, 0.0
        %v667 = vmax.f32 %v471, 0.0
        %v668 = vmax.f32 %v472, 0.0
        %v669 = vmax.f32 %v473, 0.0
        %v670 = vmax.f32 %v474, 0.0
        %v671 = vmax.f32 %v475, 0.0
        %v672 = vmax.f32 %v476, 0.0
        %v673 = vmax.f32 %v477, 0.0
        %v674 = vmax.f32 %v478, 0.0
        %v675 = vmax.f32 %v479, 0.0
        %v676 = vmax.f32 %v480, 0.0
        %v677 = vmax.f32 %v481, 0.0
        %v678 = vmax.f32 %v482, 0.0
        %v679 = vmax.f32 %v483, 0.0
        %v680 = vmax.f32 %v484, 0.0
        %v681 = vmax.f32 %v485, 0.0
        %v682 = vmax.f32 %v486, 0.0
        %v683 = vmax.f32 %v487, 0.0
        %v684 = vmax.f32 %v488, 0.0
        %v685 = vmax.f32 %v489, 0.0
        %v686 = vmax.f32 %v490, 0.0
        %v687 = vmax.f32 %v491, 0.0
        %v688 = vmax.f32 %v492, 0.0
        %v689 = vmax.f32 %v493, 0.0
        %v690 = vmax.f32 %v494, 0.0
        %v691 = vmax.f32 %v495, 0.0
        %v692 = vmax.f32 %v496, 0.0
        %v693 = vmax.f32 %v497, 0.0
        %v694 = vmax.f32 %v498, 0.0
        %v695 = vmax.f32 %v499, 0.0
        %v696 = vmax.f32 %v500, 0.0
        %v697 = vmax.f32 %v501, 0.0
        %v698 = vmax.f32 %v502, 0.0
        %v699 = vmax.f32 %v503, 0.0
        %v700 = vmax.f32 %v504, 0.0
        %v701 = vmax.f32 %v505, 0.0
        %v702 = vmax.f32 %v506, 0.0
        %v703 = vmax.f32 %v507, 0.0
        %v704 = vmax.f32 %v508, 0.0
        %v705 = vmax.f32 %v509, 0.0
        %v706 = vmax.f32 %v510, 0.0
        %v707 = vmax.f32 %v511, 0.0
        %v708 = vmax.f32 %v512, 0.0
        %v709 = vmax.f32 %v513, 0.0
        %v710 = vmax.f32 %v514, 0.0
        %v711 = vmax.f32 %v515, 0.0
        %v712 = vmax.f32 %v516, 0.0
        %v713 = vmax.f32 %v517, 0.0
        %v714 = vmax.f32 %v518, 0.0
        %v715 = vmax.f32 %v519, 0.0
        %v716 = vmax.f32 %v520, 0.0
        %v717 = vmax.f32 %v521, 0.0
        %v718 = vmax.f32 %v522, 0.0
        %v719 = vmax.f32 %v523, 0.0
        %v720 = vmax.f32 %v524, 0.0
        %v721 = vmax.f32 %v525, 0.0
        %v722 = vmax.f32 %v526, 0.0
        %v723 = vmax.f32 %v527, 0.0
        %v724 = vmax.f32 %v528, 0.0
        %v725 = vmin.f32 %v529, 6.0
        %v726 = vmin.f32 %v530, 6.0
        %v727 = vmin.f32 %v531, 6.0
        %v728 = vmin.f32 %v532, 6.0
        %v729 = vmin.f32 %v533, 6.0
        %v730 = vmin.f32 %v534, 6.0
        %v731 = vmin.f32 %v535, 6.0
        %v732 = vmin.f32 %v536, 6.0
        %v733 = vmin.f32 %v537, 6.0
        %v734 = vmin.f32 %v538, 6.0
        %v735 = vmin.f32 %v539, 6.0
        %v736 = vmin.f32 %v540, 6.0
        %v737 = vmin.f32 %v541, 6.0
        %v738 = vmin.f32 %v542, 6.0
        %v739 = vmin.f32 %v543, 6.0
        %v740 = vmin.f32 %v544, 6.0
        %v741 = vmin.f32 %v545, 6.0
        %v742 = vmin.f32 %v546, 6.0
        %v743 = vmin.f32 %v547, 6.0
        %v744 = vmin.f32 %v548, 6.0
        %v745 = vmin.f32 %v549, 6.0
        %v746 = vmin.f32 %v550, 6.0
        %v747 = vmin.f32 %v551, 6.0
        %v748 = vmin.f32 %v552, 6.0
        %v749 = vmin.f32 %v553, 6.0
        %v750 = vmin.f32 %v554, 6.0
        %v751 = vmin.f32 %v555, 6.0
        %v752 = vmin.f32 %v556, 6.0
        %v753 = vmin.f32 %v557, 6.0
        %v754 = vmin.f32 %v558, 6.0
        %v755 = vmin.f32 %v559, 6.0
        %v756 = vmin.f32 %v560, 6.0
        %v757 = vmin.f32 %v561, 6.0
        %v758 = vmin.f32 %v562, 6.0
        %v759 = vmin.f32 %v563, 6.0
        %v760 = vmin.f32 %v564, 6.0
        %v761 = vmin.f32 %v565, 6.0
        %v762 = vmin.f32 %v566, 6.0
        %v763 = vmin.f32 %v567, 6.0
        %v764 = vmin.f32 %v568, 6.0
        %v765 = vmin.f32 %v569, 6.0
        %v766 = vmin.f32 %v570, 6.0
        %v767 = vmin.f32 %v571, 6.0
        %v768 = vmin.f32 %v572, 6.0
        %v769 = vmin.f32 %v573, 6.0
        %v770 = vmin.f32 %v574, 6.0
        %v771 = vmin.f32 %v575, 6.0
        %v772 = vmin.f32 %v576, 6.0
        %v773 = vmin.f32 %v577, 6.0
        %v774 = vmin.f32 %v578, 6.0
        %v775 = vmin.f32 %v579, 6.0
        %v776 = vmin.f32 %v580, 6.0
        %v777 = vmin.f32 %v581, 6.0
        %v778 = vmin.f32 %v582, 6.0
        %v779 = vmin.f32 %v583, 6.0
        %v780 = vmin.f32 %v584, 6.0
        %v781 = vmin.f32 %v585, 6.0
        %v782 = vmin.f32 %v586, 6.0
        %v783 = vmin.f32 %v587, 6.0
        %v784 = vmin.f32 %v588, 6.0
        %v785 = vmin.f32 %v589, 6.0
        %v786 = vmin.f32 %v590, 6.0
        %v787 = vmin.f32 %v591, 6.0
        %v788 = vmin.f32 %v592, 6.0
        %v789 = vmin.f32 %v593, 6.0
        %v790 = vmin.f32 %v594, 6.0
        %v791 = vmin.f32 %v595, 6.0
        %v792 = vmin.f32 %v596, 6.0
        %v793 = vmin.f32 %v597, 6.0
        %v794 = vmin.f32 %v598, 6.0
        %v795 = vmin.f32 %v599, 6.0
        %v796 = vmin.f32 %v600, 6.0
        %v797 = vmin.f32 %v601, 6.0
        %v798 = vmin.f32 %v602, 6.0
        %v799 = vmin.f32 %v603, 6.0
        %v800 = vmin.f32 %v604, 6.0
        %v801 = vmin.f32 %v605, 6.0
        %v802 = vmin.f32 %v606, 6.0
        %v803 = vmin.f32 %v607, 6.0
        %v804 = vmin.f32 %v608, 6.0
        %v805 = vmin.f32 %v609, 6.0
        %v806 = vmin.f32 %v610, 6.0
        %v807 = vmin.f32 %v611, 6.0
        %v808 = vmin.f32 %v612, 6.0
        %v809 = vmin.f32 %v613, 6.0
        %v810 = vmin.f32 %v614, 6.0
        %v811 = vmin.f32 %v615, 6.0
        %v812 = vmin.f32 %v616, 6.0
        %v813 = vmin.f32 %v617, 6.0
        %v814 = vmin.f32 %v618, 6.0
        %v815 = vmin.f32 %v619, 6.0
        %v816 = vmin.f32 %v620, 6.0
        %v817 = vmin.f32 %v621, 6.0
        %v818 = vmin.f32 %v622, 6.0
        %v819 = vmin.f32 %v623, 6.0
        %v820 = vmin.f32 %v624, 6.0
        %v821 = vmin.f32 %v625, 6.0
        %v822 = vmin.f32 %v626, 6.0
        %v823 = vmin.f32 %v627, 6.0
        %v824 = vmin.f32 %v628, 6.0
        %v825 = vmin.f32 %v629, 6.0
        %v826 = vmin.f32 %v630, 6.0
        %v827 = vmin.f32 %v631, 6.0
        %v828 = vmin.f32 %v632, 6.0
        %v829 = vmin.f32 %v633, 6.0
        %v830 = vmin.f32 %v634, 6.0
        %v831 = vmin.f32 %v635, 6.0
        %v832 = vmin.f32 %v636, 6.0
        %v833 = vmin.f32 %v637, 6.0
        %v834 = vmin.f32 %v638, 6.0
        %v835 = vmin.f32 %v639, 6.0
        %v836 = vmin.f32 %v640, 6.0
        %v837 = vmin.f32 %v641, 6.0
        %v838 = vmin.f32 %v642, 6.0
        %v839 = vmin.f32 %v643, 6.0
        %v840 = vmin.f32 %v644, 6.0
        %v841 = vmin.f32 %v645, 6.0
        %v842 = vmin.f32 %v646, 6.0
        %v843 = vmin.f32 %v647, 6.0
        %v844 = vmin.f32 %v648, 6.0
        %v845 = vmin.f32 %v649, 6.0
        %v846 = vmin.f32 %v650, 6.0
        %v847 = vmin.f32 %v651, 6.0
        %v848 = vmin.f32 %v652, 6.0
        %v849 = vmin.f32 %v653, 6.0
        %v850 = vmin.f32 %v654, 6.0
        %v851 = vmin.f32 %v655, 6.0
        %v852 = vmin.f32 %v656, 6.0
        %v853 = vmin.f32 %v657, 6.0
        %v854 = vmin.f32 %v658, 6.0
        %v855 = vmin.f32 %v659, 6.0
        %v856 = vmin.f32 %v660, 6.0
        %v857 = vmin.f32 %v661, 6.0
        %v858 = vmin.f32 %v662, 6.0
        %v859 = vmin.f32 %v663, 6.0
        %v860 = vmin.f32 %v664, 6.0
        %v861 = vmin.f32 %v665, 6.0
        %v862 = vmin.f32 %v666, 6.0
        %v863 = vmin.f32 %v667, 6.0
        %v864 = vmin.f32 %v668, 6.0
        %v865 = vmin.f32 %v669, 6.0
        %v866 = vmin.f32 %v670, 6.0
        %v867 = vmin.f32 %v671, 6.0
        %v868 = vmin.f32 %v672, 6.0
        %v869 = vmin.f32 %v673, 6.0
        %v870 = vmin.f32 %v674, 6.0
        %v871 = vmin.f32 %v675, 6.0
        %v872 = vmin.f32 %v676, 6.0
        %v873 = vmin.f32 %v677, 6.0
        %v874 = vmin.f32 %v678, 6.0
        %v875 = vmin.f32 %v679, 6.0
        %v876 = vmin.f32 %v680, 6.0
        %v877 = vmin.f32 %v681, 6.0
        %v878 = vmin.f32 %v682, 6.0
        %v879 = vmin.f32 %v683, 6.0
        %v880 = vmin.f32 %v684, 6.0
        %v881 = vmin.f32 %v685, 6.0
        %v882 = vmin.f32 %v686, 6.0
        %v883 = vmin.f32 %v687, 6.0
        %v884 = vmin.f32 %v688, 6.0
        %v885 = vmin.f32 %v689, 6.0
        %v886 = vmin.f32 %v690, 6.0
        %v887 = vmin.f32 %v691, 6.0
        %v888 = vmin.f32 %v692, 6.0
        %v889 = vmin.f32 %v693, 6.0
        %v890 = vmin.f32 %v694, 6.0
        %v891 = vmin.f32 %v695, 6.0
        %v892 = vmin.f32 %v696, 6.0
        %v893 = vmin.f32 %v697, 6.0
        %v894 = vmin.f32 %v698, 6.0
        %v895 = vmin.f32 %v699, 6.0
        %v896 = vmin.f32 %v700, 6.0
        %v897 = vmin.f32 %v701, 6.0
        %v898 = vmin.f32 %v702, 6.0
        %v899 = vmin.f32 %v703, 6.0
        %v900 = vmin.f32 %v704, 6.0
        %v901 = vmin.f32 %v705, 6.0
        %v902 = vmin.f32 %v706, 6.0
        %v903 = vmin.f32 %v707, 6.0
        %v904 = vmin.f32 %v708, 6.0
        %v905 = vmin.f32 %v709, 6.0
        %v906 = vmin.f32 %v710, 6.0
        %v907 = vmin.f32 %v711, 6.0
        %v908 = vmin.f32 %v712, 6.0
        %v909 = vmin.f32 %v713, 6.0
        %v910 = vmin.f32 %v714, 6.0
        %v911 = vmin.f32 %v715, 6.0
        %v912 = vmin.f32 %v716, 6.0
        %v913 = vmin.f32 %v717, 6.0
        %v914 = vmin.f32 %v718, 6.0
        %v915 = vmin.f32 %v719, 6.0
        %v916 = vmin.f32 %v720, 6.0
        %v917 = vmin.f32 %v721, 6.0
        %v918 = vmin.f32 %v722, 6.0
        %v919 = vmin.f32 %v723, 6.0
        %v920 = vmin.f32 %v724, 6.0
        %v921 = vmul.f32 %v137, %v725
        %v922 = vmul.f32 %v138, %v726
        %v923 = vmul.f32 %v139, %v727
        %v924 = vmul.f32 %v140, %v728
        %v925 = vmul.f32 %v141, %v729
        %v926 = vmul.f32 %v142, %v730
        %v927 = vmul.f32 %v143, %v731
        %v928 = vmul.f32 %v144, %v732
        %v929 = vmul.f32 %v145, %v733
        %v930 = vmul.f32 %v146, %v734
        %v931 = vmul.f32 %v147, %v735
        %v932 = vmul.f32 %v148, %v736
        %v933 = vmul.f32 %v149, %v737
        %v934 = vmul.f32 %v150, %v738
        %v935 = vmul.f32 %v151, %v739
        %v936 = vmul.f32 %v152, %v740
        %v937 = vmul.f32 %v153, %v741
        %v938 = vmul.f32 %v154, %v742
        %v939 = vmul.f32 %v155, %v743
        %v940 = vmul.f32 %v156, %v744
        %v941 = vmul.f32 %v157, %v745
        %v942 = vmul.f32 %v158, %v746
        %v943 = vmul.f32 %v159, %v747
        %v944 = vmul.f32 %v160, %v748
        %v945 = vmul.f32 %v161, %v749
        %v946 = vmul.f32 %v162, %v750
        %v947 = vmul.f32 %v163, %v751
        %v948 = vmul.f32 %v164, %v752
        %v949 = vmul.f32 %v165, %v753
        %v950 = vmul.f32 %v166, %v754
        %v951 = vmul.f32 %v167, %v755
        %v952 = vmul.f32 %v168, %v756
        %v953 = vmul.f32 %v169, %v757
        %v954 = vmul.f32 %v170, %v758
        %v955 = vmul.f32 %v171, %v759
        %v956 = vmul.f32 %v172, %v760
        %v957 = vmul.f32 %v173, %v761
        %v958 = vmul.f32 %v174, %v762
        %v959 = vmul.f32 %v175, %v763
        %v960 = vmul.f32 %v176, %v764
        %v961 = vmul.f32 %v177, %v765
        %v962 = vmul.f32 %v178, %v766
        %v963 = vmul.f32 %v179, %v767
        %v964 = vmul.f32 %v180, %v768
        %v965 = vmul.f32 %v181, %v769
        %v966 = vmul.f32 %v182, %v770
        %v967 = vmul.f32 %v183, %v771
        %v968 = vmul.f32 %v184, %v772
        %v969 = vmul.f32 %v185, %v773
        %v970 = vmul.f32 %v186, %v774
        %v971 = vmul.f32 %v187, %v775
        %v972 = vmul.f32 %v188, %v776
        %v973 = vmul.f32 %v189, %v777
        %v974 = vmul.f32 %v190, %v778
        %v975 = vmul.f32 %v191, %v779
        %v976 = vmul.f32 %v192, %v780
        %v977 = vmul.f32 %v193, %v781
        %v978 = vmul.f32 %v194, %v782
        %v979 = vmul.f32 %v195, %v783
        %v980 = vmul.f32 %v196, %v784
        %v981 = vmul.f32 %v197, %v785
        %v982 = vmul.f32 %v198, %v786
        %v983 = vmul.f32 %v199, %v787
        %v984 = vmul.f32 %v200, %v788
        %v985 = vmul.f32 %v201, %v789
        %v986 = vmul.f32 %v202, %v790
        %v987 = vmul.f32 %v203, %v791
        %v988 = vmul.f32 %v204, %v792
        %v989 = vmul.f32 %v205, %v793
        %v990 = vmul.f32 %v206, %v794
        %v991 = vmul.f32 %v207, %v795
        %v992 = vmul.f32 %v208, %v796
        %v993 = vmul.f32 %v209, %v797
        %v994 = vmul.f32 %v210, %v798
        %v995 = vmul.f32 %v211, %v799
        %v996 = vmul.f32 %v212, %v800
        %v997 = vmul.f32 %v213, %v801
        %v998 = vmul.f32 %v214, %v802
        %v999 = vmul.f32 %v215, %v803
        %v1000 = vmul.f32 %v216, %v804
        %v1001 = vmul.f32 %v217, %v805
        %v1002 = vmul.f32 %v218, %v806
        %v1003 = vmul.f32 %v219, %v807
        %v1004 = vmul.f32 %v220, %v808
        %v1005 = vmul.f32 %v221, %v809
        %v1006 = vmul.f32 %v222, %v810
        %v1007 = vmul.f32 %v223, %v811
        %v1008 = vmul.f32 %v224, %v812
        %v1009 = vmul.f32 %v225, %v813
        %v1010 = vmul.f32 %v226, %v814
        %v1011 = vmul.f32 %v227, %v815
        %v1012 = vmul.f32 %v228, %v816
        %v1013 = vmul.f32 %v229, %v817
        %v1014 = vmul.f32 %v230, %v818
        %v1015 = vmul.f32 %v231, %v819
        %v1016 = vmul.f32 %v232, %v820
        %v1017 = vmul.f32 %v233, %v821
        %v1018 = vmul.f32 %v234, %v822
        %v1019 = vmul.f32 %v235, %v823
        %v1020 = vmul.f32 %v236, %v824
        %v1021 = vmul.f32 %v237, %v825
        %v1022 = vmul.f32 %v238, %v826
        %v1023 = vmul.f32 %v239, %v827
        %v1024 = vmul.f32 %v240, %v828
        %v1025 = vmul.f32 %v241, %v829
        %v1026 = vmul.f32 %v242, %v830
        %v1027 = vmul.f32 %v243, %v831
        %v1028 = vmul.f32 %v244, %v832
        %v1029 = vmul.f32 %v245, %v833
        %v1030 = vmul.f32 %v246, %v834
        %v1031 = vmul.f32 %v247, %v835
        %v1032 = vmul.f32 %v248, %v836
        %v1033 = vmul.f32 %v249, %v837
        %v1034 = vmul.f32 %v250, %v838
        %v1035 = vmul.f32 %v251, %v839
        %v1036 = vmul.f32 %v252, %v840
        %v1037 = vmul.f32 %v253, %v841
        %v1038 = vmul.f32 %v254, %v842
        %v1039 = vmul.f32 %v255, %v843
        %v1040 = vmul.f32 %v256, %v844
        %v1041 = vmul.f32 %v257, %v845
        %v1042 = vmul.f32 %v258, %v846
        %v1043 = vmul.f32 %v259, %v847
        %v1044 = vmul.f32 %v260, %v848
        %v1045 = vmul.f32 %v261, %v849
        %v1046 = vmul.f32 %v262, %v850
        %v1047 = vmul.f32 %v263, %v851
        %v1048 = vmul.f32 %v264, %v852
        %v1049 = vmul.f32 %v265, %v853
        %v1050 = vmul.f32 %v266, %v854
        %v1051 = vmul.f32 %v267, %v855
        %v1052 = vmul.f32 %v268, %v856
        %v1053 = vmul.f32 %v269, %v857
        %v1054 = vmul.f32 %v270, %v858
        %v1055 = vmul.f32 %v271, %v859
        %v1056 = vmul.f32 %v272, %v860
        %v1057 = vmul.f32 %v273, %v861
        %v1058 = vmul.f32 %v274, %v862
        %v1059 = vmul.f32 %v275, %v863
        %v1060 = vmul.f32 %v276, %v864
        %v1061 = vmul.f32 %v277, %v865
        %v1062 = vmul.f32 %v278, %v866
        %v1063 = vmul.f32 %v279, %v867
        %v1064 = vmul.f32 %v280, %v868
        %v1065 = vmul.f32 %v281, %v869
        %v1066 = vmul.f32 %v282, %v870
        %v1067 = vmul.f32 %v283, %v871
        %v1068 = vmul.f32 %v284, %v872
        %v1069 = vmul.f32 %v285, %v873
        %v1070 = vmul.f32 %v286, %v874
        %v1071 = vmul.f32 %v287, %v875
        %v1072 = vmul.f32 %v288, %v876
        %v1073 = vmul.f32 %v289, %v877
        %v1074 = vmul.f32 %v290, %v878
        %v1075 = vmul.f32 %v291, %v879
        %v1076 = vmul.f32 %v292, %v880
        %v1077 = vmul.f32 %v293, %v881
        %v1078 = vmul.f32 %v294, %v882
        %v1079 = vmul.f32 %v295, %v883
        %v1080 = vmul.f32 %v296, %v884
        %v1081 = vmul.f32 %v297, %v885
        %v1082 = vmul.f32 %v298, %v886
        %v1083 = vmul.f32 %v299, %v887
        %v1084 = vmul.f32 %v300, %v888
        %v1085 = vmul.f32 %v301, %v889
        %v1086 = vmul.f32 %v302, %v890
        %v1087 = vmul.f32 %v303, %v891
        %v1088 = vmul.f32 %v304, %v892
        %v1089 = vmul.f32 %v305, %v893
        %v1090 = vmul.f32 %v306, %v894
        %v1091 = vmul.f32 %v307, %v895
        %v1092 = vmul.f32 %v308, %v896
        %v1093 = vmul.f32 %v309, %v897
        %v1094 = vmul.f32 %v310, %v898
        %v1095 = vmul.f32 %v311, %v899
        %v1096 = vmul.f32 %v312, %v900
        %v1097 = vmul.f32 %v313, %v901
        %v1098 = vmul.f32 %v314, %v902
        %v1099 = vmul.f32 %v315, %v903
        %v1100 = vmul.f32 %v316, %v904
        %v1101 = vmul.f32 %v317, %v905
        %v1102 = vmul.f32 %v318, %v906
        %v1103 = vmul.f32 %v319, %v907
        %v1104 = vmul.f32 %v320, %v908
        %v1105 = vmul.f32 %v321, %v909
        %v1106 = vmul.f32 %v322, %v910
        %v1107 = vmul.f32 %v323, %v911
        %v1108 = vmul.f32 %v324, %v912
        %v1109 = vmul.f32 %v325, %v913
        %v1110 = vmul.f32 %v326, %v914
        %v1111 = vmul.f32 %v327, %v915
        %v1112 = vmul.f32 %v328, %v916
        %v1113 = vmul.f32 %v329, %v917
        %v1114 = vmul.f32 %v330, %v918
        %v1115 = vmul.f32 %v331, %v919
        %v1116 = vmul.f32 %v332, %v920
        %v1117 = vmul.f32 %v921, 0.16666667
        %v1118 = vmul.f32 %v922, 0.16666667
        %v1119 = vmul.f32 %v923, 0.16666667
        %v1120 = vmul.f32 %v924, 0.16666667
        %v1121 = vmul.f32 %v925, 0.16666667
        %v1122 = vmul.f32 %v926, 0.16666667
        %v1123 = vmul.f32 %v927, 0.16666667
        %v1124 = vmul.f32 %v928, 0.16666667
        %v1125 = vmul.f32 %v929, 0.16666667
        %v1126 = vmul.f32 %v930, 0.16666667
        %v1127 = vmul.f32 %v931, 0.16666667
        %v1128 = vmul.f32 %v932, 0.16666667
        %v1129 = vmul.f32 %v933, 0.16666667
        %v1130 = vmul.f32 %v934, 0.16666667
        %v1131 = vmul.f32 %v935, 0.16666667
        %v1132 = vmul.f32 %v936, 0.16666667
        %v1133 = vmul.f32 %v937, 0.16666667
        %v1134 = vmul.f32 %v938, 0.16666667
        %v1135 = vmul.f32 %v939, 0.16666667
        %v1136 = vmul.f32 %v940, 0.16666667
        %v1137 = vmul.f32 %v941, 0.16666667
        %v1138 = vmul.f32 %v942, 0.16666667
        %v1139 = vmul.f32 %v943, 0.16666667
        %v1140 = vmul.f32 %v944, 0.16666667
        %v1141 = vmul.f32 %v945, 0.16666667
        %v1142 = vmul.f32 %v946, 0.16666667
        %v1143 = vmul.f32 %v947, 0.16666667
        %v1144 = vmul.f32 %v948, 0.16666667
        %v1145 = vmul.f32 %v949, 0.16666667
        %v1146 = vmul.f32 %v950, 0.16666667
        %v1147 = vmul.f32 %v951, 0.16666667
        %v1148 = vmul.f32 %v952, 0.16666667
        %v1149 = vmul.f32 %v953, 0.16666667
        %v1150 = vmul.f32 %v954, 0.16666667
        %v1151 = vmul.f32 %v955, 0.16666667
        %v1152 = vmul.f32 %v956, 0.16666667
        %v1153 = vmul.f32 %v957, 0.16666667
        %v1154 = vmul.f32 %v958, 0.16666667
        %v1155 = vmul.f32 %v959, 0.16666667
        %v1156 = vmul.f32 %v960, 0.16666667
        %v1157 = vmul.f32 %v961, 0.16666667
        %v1158 = vmul.f32 %v962, 0.16666667
        %v1159 = vmul.f32 %v963, 0.16666667
        %v1160 = vmul.f32 %v964, 0.16666667
        %v1161 = vmul.f32 %v965, 0.16666667
        %v1162 = vmul.f32 %v966, 0.16666667
        %v1163 = vmul.f32 %v967, 0.16666667
        %v1164 = vmul.f32 %v968, 0.16666667
        %v1165 = vmul.f32 %v969, 0.16666667
        %v1166 = vmul.f32 %v970, 0.16666667
        %v1167 = vmul.f32 %v971, 0.16666667
        %v1168 = vmul.f32 %v972, 0.16666667
        %v1169 = vmul.f32 %v973, 0.16666667
        %v1170 = vmul.f32 %v974, 0.16666667
        %v1171 = vmul.f32 %v975, 0.16666667
        %v1172 = vmul.f32 %v976, 0.16666667
        %v1173 = vmul.f32 %v977, 0.16666667
        %v1174 = vmul.f32 %v978, 0.16666667
        %v1175 = vmul.f32 %v979, 0.16666667
        %v1176 = vmul.f32 %v980, 0.16666667
        %v1177 = vmul.f32 %v981, 0.16666667
        %v1178 = vmul.f32 %v982, 0.16666667
        %v1179 = vmul.f32 %v983, 0.16666667
        %v1180 = vmul.f32 %v984, 0.16666667
        %v1181 = vmul.f32 %v985, 0.16666667
        %v1182 = vmul.f32 %v986, 0.16666667
        %v1183 = vmul.f32 %v987, 0.16666667
        %v1184 = vmul.f32 %v988, 0.16666667
        %v1185 = vmul.f32 %v989, 0.16666667
        %v1186 = vmul.f32 %v990, 0.16666667
        %v1187 = vmul.f32 %v991, 0.16666667
        %v1188 = vmul.f32 %v992, 0.16666667
        %v1189 = vmul.f32 %v993, 0.16666667
        %v1190 = vmul.f32 %v994, 0.16666667
        %v1191 = vmul.f32 %v995, 0.16666667
        %v1192 = vmul.f32 %v996, 0.16666667
        %v1193 = vmul.f32 %v997, 0.16666667
        %v1194 = vmul.f32 %v998, 0.16666667
        %v1195 = vmul.f32 %v999, 0.16666667
        %v1196 = vmul.f32 %v1000, 0.16666667
        %v1197 = vmul.f32 %v1001, 0.16666667
        %v1198 = vmul.f32 %v1002, 0.16666667
        %v1199 = vmul.f32 %v1003, 0.16666667
        %v1200 = vmul.f32 %v1004, 0.16666667
        %v1201 = vmul.f32 %v1005, 0.16666667
        %v1202 = vmul.f32 %v1006, 0.16666667
        %v1203 = vmul.f32 %v1007, 0.16666667
        %v1204 = vmul.f32 %v1008, 0.16666667
        %v1205 = vmul.f32 %v1009, 0.16666667
        %v1206 = vmul.f32 %v1010, 0.16666667
        %v1207 = vmul.f32 %v1011, 0.16666667
        %v1208 = vmul.f32 %v1012, 0.16666667
        %v1209 = vmul.f32 %v1013, 0.16666667
        %v1210 = vmul.f32 %v1014, 0.16666667
        %v1211 = vmul.f32 %v1015, 0.16666667
        %v1212 = vmul.f32 %v1016, 0.16666667
        %v1213 = vmul.f32 %v1017, 0.16666667
        %v1214 = vmul.f32 %v1018, 0.16666667
        %v1215 = vmul.f32 %v1019, 0.16666667
        %v1216 = vmul.f32 %v1020, 0.16666667
        %v1217 = vmul.f32 %v1021, 0.16666667
        %v1218 = vmul.f32 %v1022, 0.16666667
        %v1219 = vmul.f32 %v1023, 0.16666667
        %v1220 = vmul.f32 %v1024, 0.16666667
        %v1221 = vmul.f32 %v1025, 0.16666667
        %v1222 = vmul.f32 %v1026, 0.16666667
        %v1223 = vmul.f32 %v1027, 0.16666667
        %v1224 = vmul.f32 %v1028, 0.16666667
        %v1225 = vmul.f32 %v1029, 0.16666667
        %v1226 = vmul.f32 %v1030, 0.16666667
        %v1227 = vmul.f32 %v1031, 0.16666667
        %v1228 = vmul.f32 %v1032, 0.16666667
        %v1229 = vmul.f32 %v1033, 0.16666667
        %v1230 = vmul.f32 %v1034, 0.16666667
        %v1231 = vmul.f32 %v1035, 0.16666667
        %v1232 = vmul.f32 %v1036, 0.16666667
        %v1233 = vmul.f32 %v1037, 0.16666667
        %v1234 = vmul.f32 %v1038, 0.16666667
        %v1235 = vmul.f32 %v1039, 0.16666667
        %v1236 = vmul.f32 %v1040, 0.16666667
        %v1237 = vmul.f32 %v1041, 0.16666667
        %v1238 = vmul.f32 %v1042, 0.16666667
        %v1239 = vmul.f32 %v1043, 0.16666667
        %v1240 = vmul.f32 %v1044, 0.16666667
        %v1241 = vmul.f32 %v1045, 0.16666667
        %v1242 = vmul.f32 %v1046, 0.16666667
        %v1243 = vmul.f32 %v1047, 0.16666667
        %v1244 = vmul.f32 %v1048, 0.16666667
        %v1245 = vmul.f32 %v1049, 0.16666667
        %v1246 = vmul.f32 %v1050, 0.16666667
        %v1247 = vmul.f32 %v1051, 0.16666667
        %v1248 = vmul.f32 %v1052, 0.16666667
        %v1249 = vmul.f32 %v1053, 0.16666667
        %v1250 = vmul.f32 %v1054, 0.16666667
        %v1251 = vmul.f32 %v1055, 0.16666667
        %v1252 = vmul.f32 %v1056, 0.16666667
        %v1253 = vmul.f32 %v1057, 0.16666667
        %v1254 = vmul.f32 %v1058, 0.16666667
        %v1255 = vmul.f32 %v1059, 0.16666667
        %v1256 = vmul.f32 %v1060, 0.16666667
        %v1257 = vmul.f32 %v1061, 0.16666667
        %v1258 = vmul.f32 %v1062, 0.16666667
        %v1259 = vmul.f32 %v1063, 0.16666667
        %v1260 = vmul.f32 %v1064, 0.16666667
        %v1261 = vmul.f32 %v1065, 0.16666667
        %v1262 = vmul.f32 %v1066, 0.16666667
        %v1263 = vmul.f32 %v1067, 0.16666667
        %v1264 = vmul.f32 %v1068, 0.16666667
        %v1265 = vmul.f32 %v1069, 0.16666667
        %v1266 = vmul.f32 %v1070, 0.16666667
        %v1267 = vmul.f32 %v1071, 0.16666667
        %v1268 = vmul.f32 %v1072, 0.16666667
        %v1269 = vmul.f32 %v1073, 0.16666667
        %v1270 = vmul.f32 %v1074, 0.16666667
        %v1271 = vmul.f32 %v1075, 0.16666667
        %v1272 = vmul.f32 %v1076, 0.16666667
        %v1273 = vmul.f32 %v1077, 0.16666667
        %v1274 = vmul.f32 %v1078, 0.16666667
        %v1275 = vmul.f32 %v1079, 0.16666667
        %v1276 = vmul.f32 %v1080, 0.16666667
        %v1277 = vmul.f32 %v1081, 0.16666667
        %v1278 = vmul.f32 %v1082, 0.16666667
        %v1279 = vmul.f32 %v1083, 0.16666667
        %v1280 = vmul.f32 %v1084, 0.16666667
        %v1281 = vmul.f32 %v1085, 0.16666667
        %v1282 = vmul.f32 %v1086, 0.16666667
        %v1283 = vmul.f32 %v1087, 0.16666667
        %v1284 = vmul.f32 %v1088, 0.16666667
        %v1285 = vmul.f32 %v1089, 0.16666667
        %v1286 = vmul.f32 %v1090, 0.16666667
        %v1287 = vmul.f32 %v1091, 0.16666667
        %v1288 = vmul.f32 %v1092, 0.16666667
        %v1289 = vmul.f32 %v1093, 0.16666667
        %v1290 = vmul.f32 %v1094, 0.16666667
        %v1291 = vmul.f32 %v1095, 0.16666667
        %v1292 = vmul.f32 %v1096, 0.16666667
        %v1293 = vmul.f32 %v1097, 0.16666667
        %v1294 = vmul.f32 %v1098, 0.16666667
        %v1295 = vmul.f32 %v1099, 0.16666667
        %v1296 = vmul.f32 %v1100, 0.16666667
        %v1297 = vmul.f32 %v1101, 0.16666667
        %v1298 = vmul.f32 %v1102, 0.16666667
        %v1299 = vmul.f32 %v1103, 0.16666667
        %v1300 = vmul.f32 %v1104, 0.16666667
        %v1301 = vmul.f32 %v1105, 0.16666667
        %v1302 = vmul.f32 %v1106, 0.16666667
        %v1303 = vmul.f32 %v1107, 0.16666667
        %v1304 = vmul.f32 %v1108, 0.16666667
        %v1305 = vmul.f32 %v1109, 0.16666667
        %v1306 = vmul.f32 %v1110, 0.16666667
        %v1307 = vmul.f32 %v1111, 0.16666667
        %v1308 = vmul.f32 %v1112, 0.16666667
        %v1309 = vmul.f32 %v1113, 0.16666667
        %v1310 = vmul.f32 %v1114, 0.16666667
        %v1311 = vmul.f32 %v1115, 0.16666667
        %v1312 = vmul.f32 %v1116, 0.16666667
        %1313 = vst [vmem:[%s134] sm:$0xff] %v1117
        %1314 = vst [vmem:[%s134 + $0x8] sm:$0xff] %v1118
        %1315 = vst [vmem:[%s134 + $0x10] sm:$0xff] %v1119
        %1316 = vst [vmem:[%s134 + $0x18] sm:$0xff] %v1120
        %1317 = vst [vmem:[%s134 + $0x20] sm:$0xff] %v1121
        %1318 = vst [vmem:[%s134 + $0x28] sm:$0xff] %v1122
        %1319 = vst [vmem:[%s134 + $0x30] sm:$0xff] %v1123
        %1320 = vst [vmem:[%s134 + $0x38] sm:$0xff] %v1124
        %1321 = vst [vmem:[%s134 + $0x40] sm:$0xff] %v1125
        %1322 = vst [vmem:[%s134 + $0x48] sm:$0xff] %v1126
        %1323 = vst [vmem:[%s134 + $0x50] sm:$0xff] %v1127
        %1324 = vst [vmem:[%s134 + $0x58] sm:$0xff] %v1128
        %1325 = vst [vmem:[%s134 + $0x60] sm:$0xff] %v1129
        %1326 = vst [vmem:[%s134 + $0x68] sm:$0xff] %v1130
        %1327 = vst [vmem:[%s134 + $0x70] sm:$0xff] %v1131
        %1328 = vst [vmem:[%s134 + $0x78] sm:$0xff] %v1132
        %1329 = vst [vmem:[%s134 + $0x80] sm:$0xff] %v1133
        %1330 = vst [vmem:[%s134 + $0x88] sm:$0xff] %v1134
        %1331 = vst [vmem:[%s134 + $0x90] sm:$0xff] %v1135
        %1332 = vst [vmem:[%s134 + $0x98] sm:$0xff] %v1136
        %1333 = vst [vmem:[%s134 + $0xa0] sm:$0xff] %v1137
        %1334 = vst [vmem:[%s134 + $0xa8] sm:$0xff] %v1138
        %1335 = vst [vmem:[%s134 + $0xb0] sm:$0xff] %v1139
        %1336 = vst [vmem:[%s134 + $0xb8] sm:$0xff] %v1140
        %1337 = vst [vmem:[%s134 + $0xc0] sm:$0xff] %v1141
        %1338 = vst [vmem:[%s134 + $0xc8] sm:$0xff] %v1142
        %1339 = vst [vmem:[%s134 + $0xd0] sm:$0xff] %v1143
        %1340 = vst [vmem:[%s134 + $0xd8] sm:$0xff] %v1144
        %1341 = vst [vmem:[%s134 + $0xe0] sm:$0xff] %v1145
        %1342 = vst [vmem:[%s134 + $0xe8] sm:$0xff] %v1146
        %1343 = vst [vmem:[%s134 + $0xf0] sm:$0xff] %v1147
        %1344 = vst [vmem:[%s134 + $0xf8] sm:$0xff] %v1148
        %1345 = vst [vmem:[%s134 + $0x100] sm:$0xff] %v1149
        %1346 = vst [vmem:[%s134 + $0x108] sm:$0xff] %v1150
        %1347 = vst [vmem:[%s134 + $0x110] sm:$0xff] %v1151
        %1348 = vst [vmem:[%s134 + $0x118] sm:$0xff] %v1152
        %1349 = vst [vmem:[%s134 + $0x120] sm:$0xff] %v1153
        %1350 = vst [vmem:[%s134 + $0x128] sm:$0xff] %v1154
        %1351 = vst [vmem:[%s134 + $0x130] sm:$0xff] %v1155
        %1352 = vst [vmem:[%s134 + $0x138] sm:$0xff] %v1156
        %1353 = vst [vmem:[%s134 + $0x140] sm:$0xff] %v1157
        %1354 = vst [vmem:[%s134 + $0x148] sm:$0xff] %v1158
        %1355 = vst [vmem:[%s134 + $0x150] sm:$0xff] %v1159
        %1356 = vst [vmem:[%s134 + $0x158] sm:$0xff] %v1160
        %1357 = vst [vmem:[%s134 + $0x160] sm:$0xff] %v1161
        %1358 = vst [vmem:[%s134 + $0x168] sm:$0xff] %v1162
        %1359 = vst [vmem:[%s134 + $0x170] sm:$0xff] %v1163
        %1360 = vst [vmem:[%s134 + $0x178] sm:$0xff] %v1164
        %1361 = vst [vmem:[%s134 + $0x180] sm:$0xff] %v1165
        %1362 = vst [vmem:[%s134 + $0x188] sm:$0xff] %v1166
        %1363 = vst [vmem:[%s134 + $0x190] sm:$0xff] %v1167
        %1364 = vst [vmem:[%s134 + $0x198] sm:$0xff] %v1168
        %1365 = vst [vmem:[%s134 + $0x1a0] sm:$0xff] %v1169
        %1366 = vst [vmem:[%s134 + $0x1a8] sm:$0xff] %v1170
        %1367 = vst [vmem:[%s134 + $0x1b0] sm:$0xff] %v1171
        %1368 = vst [vmem:[%s134 + $0x1b8] sm:$0xff] %v1172
        %1369 = vst [vmem:[%s134 + $0x1c0] sm:$0xff] %v1173
        %1370 = vst [vmem:[%s134 + $0x1c8] sm:$0xff] %v1174
        %1371 = vst [vmem:[%s134 + $0x1d0] sm:$0xff] %v1175
        %1372 = vst [vmem:[%s134 + $0x1d8] sm:$0xff] %v1176
        %1373 = vst [vmem:[%s134 + $0x1e0] sm:$0xff] %v1177
        %1374 = vst [vmem:[%s134 + $0x1e8] sm:$0xff] %v1178
        %1375 = vst [vmem:[%s134 + $0x1f0] sm:$0xff] %v1179
        %1376 = vst [vmem:[%s134 + $0x1f8] sm:$0xff] %v1180
        %1377 = vst [vmem:[%s134 + $0x200] sm:$0xff] %v1181
        %1378 = vst [vmem:[%s134 + $0x208] sm:$0xff] %v1182
        %1379 = vst [vmem:[%s134 + $0x210] sm:$0xff] %v1183
        %1380 = vst [vmem:[%s134 + $0x218] sm:$0xff] %v1184
        %1381 = vst [vmem:[%s134 + $0x220] sm:$0xff] %v1185
        %1382 = vst [vmem:[%s134 + $0x228] sm:$0xff] %v1186
        %1383 = vst [vmem:[%s134 + $0x230] sm:$0xff] %v1187
        %1384 = vst [vmem:[%s134 + $0x238] sm:$0xff] %v1188
        %1385 = vst [vmem:[%s134 + $0x240] sm:$0xff] %v1189
        %1386 = vst [vmem:[%s134 + $0x248] sm:$0xff] %v1190
        %1387 = vst [vmem:[%s134 + $0x250] sm:$0xff] %v1191
        %1388 = vst [vmem:[%s134 + $0x258] sm:$0xff] %v1192
        %1389 = vst [vmem:[%s134 + $0x260] sm:$0xff] %v1193
        %1390 = vst [vmem:[%s134 + $0x268] sm:$0xff] %v1194
        %1391 = vst [vmem:[%s134 + $0x270] sm:$0xff] %v1195
        %1392 = vst [vmem:[%s134 + $0x278] sm:$0xff] %v1196
        %1393 = vst [vmem:[%s134 + $0x280] sm:$0xff] %v1197
        %1394 = vst [vmem:[%s134 + $0x288] sm:$0xff] %v1198
        %1395 = vst [vmem:[%s134 + $0x290] sm:$0xff] %v1199
        %1396 = vst [vmem:[%s134 + $0x298] sm:$0xff] %v1200
        %1397 = vst [vmem:[%s134 + $0x2a0] sm:$0xff] %v1201
        %1398 = vst [vmem:[%s134 + $0x2a8] sm:$0xff] %v1202
        %1399 = vst [vmem:[%s134 + $0x2b0] sm:$0xff] %v1203
        %1400 = vst [vmem:[%s134 + $0x2b8] sm:$0xff] %v1204
        %1401 = vst [vmem:[%s134 + $0x2c0] sm:$0xff] %v1205
        %1402 = vst [vmem:[%s134 + $0x2c8] sm:$0xff] %v1206
        %1403 = vst [vmem:[%s134 + $0x2d0] sm:$0xff] %v1207
        %1404 = vst [vmem:[%s134 + $0x2d8] sm:$0xff] %v1208
        %1405 = vst [vmem:[%s134 + $0x2e0] sm:$0xff] %v1209
        %1406 = vst [vmem:[%s134 + $0x2e8] sm:$0xff] %v1210
        %1407 = vst [vmem:[%s134 + $0x2f0] sm:$0xff] %v1211
        %1408 = vst [vmem:[%s134 + $0x2f8] sm:$0xff] %v1212
        %1409 = vst [vmem:[%s134 + $0x300] sm:$0xff] %v1213
        %1410 = vst [vmem:[%s134 + $0x308] sm:$0xff] %v1214
        %1411 = vst [vmem:[%s134 + $0x310] sm:$0xff] %v1215
        %1412 = vst [vmem:[%s134 + $0x318] sm:$0xff] %v1216
        %1413 = vst [vmem:[%s134 + $0x320] sm:$0xff] %v1217
        %1414 = vst [vmem:[%s134 + $0x328] sm:$0xff] %v1218
        %1415 = vst [vmem:[%s134 + $0x330] sm:$0xff] %v1219
        %1416 = vst [vmem:[%s134 + $0x338] sm:$0xff] %v1220
        %1417 = vst [vmem:[%s134 + $0x340] sm:$0xff] %v1221
        %1418 = vst [vmem:[%s134 + $0x348] sm:$0xff] %v1222
        %1419 = vst [vmem:[%s134 + $0x350] sm:$0xff] %v1223
        %1420 = vst [vmem:[%s134 + $0x358] sm:$0xff] %v1224
        %1421 = vst [vmem:[%s134 + $0x360] sm:$0xff] %v1225
        %1422 = vst [vmem:[%s134 + $0x368] sm:$0xff] %v1226
        %1423 = vst [vmem:[%s134 + $0x370] sm:$0xff] %v1227
        %1424 = vst [vmem:[%s134 + $0x378] sm:$0xff] %v1228
        %1425 = vst [vmem:[%s134 + $0x380] sm:$0xff] %v1229
        %1426 = vst [vmem:[%s134 + $0x388] sm:$0xff] %v1230
        %1427 = vst [vmem:[%s134 + $0x390] sm:$0xff] %v1231
        %1428 = vst [vmem:[%s134 + $0x398] sm:$0xff] %v1232
        %1429 = vst [vmem:[%s134 + $0x3a0] sm:$0xff] %v1233
        %1430 = vst [vmem:[%s134 + $0x3a8] sm:$0xff] %v1234
        %1431 = vst [vmem:[%s134 + $0x3b0] sm:$0xff] %v1235
        %1432 = vst [vmem:[%s134 + $0x3b8] sm:$0xff] %v1236
        %1433 = vst [vmem:[%s134 + $0x3c0] sm:$0xff] %v1237
        %1434 = vst [vmem:[%s134 + $0x3c8] sm:$0xff] %v1238
        %1435 = vst [vmem:[%s134 + $0x3d0] sm:$0xff] %v1239
        %1436 = vst [vmem:[%s134 + $0x3d8] sm:$0xff] %v1240
        %1437 = vst [vmem:[%s134 + $0x3e0] sm:$0xff] %v1241
        %1438 = vst [vmem:[%s134 + $0x3e8] sm:$0xff] %v1242
        %1439 = vst [vmem:[%s134 + $0x3f0] sm:$0xff] %v1243
        %1440 = vst [vmem:[%s134 + $0x3f8] sm:$0xff] %v1244
        %1441 = vst [vmem:[%s134 + $0x400] sm:$0xff] %v1245
        %1442 = vst [vmem:[%s134 + $0x408] sm:$0xff] %v1246
        %1443 = vst [vmem:[%s134 + $0x410] sm:$0xff] %v1247
        %1444 = vst [vmem:[%s134 + $0x418] sm:$0xff] %v1248
        %1445 = vst [vmem:[%s134 + $0x420] sm:$0xff] %v1249
        %1446 = vst [vmem:[%s134 + $0x428] sm:$0xff] %v1250
        %1447 = vst [vmem:[%s134 + $0x430] sm:$0xff] %v1251
        %1448 = vst [vmem:[%s134 + $0x438] sm:$0xff] %v1252
        %1449 = vst [vmem:[%s134 + $0x440] sm:$0xff] %v1253
        %1450 = vst [vmem:[%s134 + $0x448] sm:$0xff] %v1254
        %1451 = vst [vmem:[%s134 + $0x450] sm:$0xff] %v1255
        %1452 = vst [vmem:[%s134 + $0x458] sm:$0xff] %v1256
        %1453 = vst [vmem:[%s134 + $0x460] sm:$0xff] %v1257
        %1454 = vst [vmem:[%s134 + $0x468] sm:$0xff] %v1258
        %1455 = vst [vmem:[%s134 + $0x470] sm:$0xff] %v1259
        %1456 = vst [vmem:[%s134 + $0x478] sm:$0xff] %v1260
        %1457 = vst [vmem:[%s134 + $0x480] sm:$0xff] %v1261
        %1458 = vst [vmem:[%s134 + $0x488] sm:$0xff] %v1262
        %1459 = vst [vmem:[%s134 + $0x490] sm:$0xff] %v1263
        %1460 = vst [vmem:[%s134 + $0x498] sm:$0xff] %v1264
        %1461 = vst [vmem:[%s134 + $0x4a0] sm:$0xff] %v1265
        %1462 = vst [vmem:[%s134 + $0x4a8] sm:$0xff] %v1266
        %1463 = vst [vmem:[%s134 + $0x4b0] sm:$0xff] %v1267
        %1464 = vst [vmem:[%s134 + $0x4b8] sm:$0xff] %v1268
        %1465 = vst [vmem:[%s134 + $0x4c0] sm:$0xff] %v1269
        %1466 = vst [vmem:[%s134 + $0x4c8] sm:$0xff] %v1270
        %1467 = vst [vmem:[%s134 + $0x4d0] sm:$0xff] %v1271
        %1468 = vst [vmem:[%s134 + $0x4d8] sm:$0xff] %v1272
        %1469 = vst [vmem:[%s134 + $0x4e0] sm:$0xff] %v1273
        %1470 = vst [vmem:[%s134 + $0x4e8] sm:$0xff] %v1274
        %1471 = vst [vmem:[%s134 + $0x4f0] sm:$0xff] %v1275
        %1472 = vst [vmem:[%s134 + $0x4f8] sm:$0xff] %v1276
        %1473 = vst [vmem:[%s134 + $0x500] sm:$0xff] %v1277
        %1474 = vst [vmem:[%s134 + $0x508] sm:$0xff] %v1278
        %1475 = vst [vmem:[%s134 + $0x510] sm:$0xff] %v1279
        %1476 = vst [vmem:[%s134 + $0x518] sm:$0xff] %v1280
        %1477 = vst [vmem:[%s134 + $0x520] sm:$0xff] %v1281
        %1478 = vst [vmem:[%s134 + $0x528] sm:$0xff] %v1282
        %1479 = vst [vmem:[%s134 + $0x530] sm:$0xff] %v1283
        %1480 = vst [vmem:[%s134 + $0x538] sm:$0xff] %v1284
        %1481 = vst [vmem:[%s134 + $0x540] sm:$0xff] %v1285
        %1482 = vst [vmem:[%s134 + $0x548] sm:$0xff] %v1286
        %1483 = vst [vmem:[%s134 + $0x550] sm:$0xff] %v1287
        %1484 = vst [vmem:[%s134 + $0x558] sm:$0xff] %v1288
        %1485 = vst [vmem:[%s134 + $0x560] sm:$0xff] %v1289
        %1486 = vst [vmem:[%s134 + $0x568] sm:$0xff] %v1290
        %1487 = vst [vmem:[%s134 + $0x570] sm:$0xff] %v1291
        %1488 = vst [vmem:[%s134 + $0x578] sm:$0xff] %v1292
        %1489 = vst [vmem:[%s134 + $0x580] sm:$0xff] %v1293
        %1490 = vst [vmem:[%s134 + $0x588] sm:$0xff] %v1294
        %1491 = vst [vmem:[%s134 + $0x590] sm:$0xff] %v1295
        %1492 = vst [vmem:[%s134 + $0x598] sm:$0xff] %v1296
        %1493 = vst [vmem:[%s134 + $0x5a0] sm:$0xff] %v1297
        %1494 = vst [vmem:[%s134 + $0x5a8] sm:$0xff] %v1298
        %1495 = vst [vmem:[%s134 + $0x5b0] sm:$0xff] %v1299
        %1496 = vst [vmem:[%s134 + $0x5b8] sm:$0xff] %v1300
        %1497 = vst [vmem:[%s134 + $0x5c0] sm:$0xff] %v1301
        %1498 = vst [vmem:[%s134 + $0x5c8] sm:$0xff] %v1302
        %1499 = vst [vmem:[%s134 + $0x5d0] sm:$0xff] %v1303
        %1500 = vst [vmem:[%s134 + $0x5d8] sm:$0xff] %v1304
        %1501 = vst [vmem:[%s134 + $0x5e0] sm:$0xff] %v1305
        %1502 = vst [vmem:[%s134 + $0x5e8] sm:$0xff] %v1306
        %1503 = vst [vmem:[%s134 + $0x5f0] sm:$0xff] %v1307
        %1504 = vst [vmem:[%s134 + $0x5f8] sm:$0xff] %v1308
        %1505 = vst [vmem:[%s134 + $0x600] sm:$0xff] %v1309
        %1506 = vst [vmem:[%s134 + $0x608] sm:$0xff] %v1310
        %1507 = vst [vmem:[%s134 + $0x610] sm:$0xff] %v1311
        %1508 = vst [vmem:[%s134 + $0x618] sm:$0xff] %v1312
        %s1509 = sand.u32 %s52, 1
        %s1510 = scalar_lea.sflag [#allocation4], %s1509
        %s1511 = sand.u32 %s52, 1
        %s1512 = smul.addr %s1511, 1568
        %s1513 = scalar_lea.vmem [#allocation5], %s1512
        // Predicated region
        $region29: #{tpu_custom_call.1} parent=23 // pred_check
          %p1514 = pneg %p62
        $region30: #{tpu_custom_call.1} parent=23 // pred_check_branch
          %1516 = sbr.rel (%p1514) target = $region32
        $region31: #{tpu_custom_call.1} parent=23 // pred_region
          %s1517 = smul.u32 196, %s18
          %s1519 = ssub.s32 25088, 25088
          %1520 = vsyncadd %s1510, %s1519
          %s1521 = smul.addr %s1517, 128
          %s1522 = scalar_lea.hbm %s1, %s1521
          %s1523 = sshll.u32 %s1513, 4
          %s1524 = int_to_ptr.vmem [resolvable:$true] %s1523
          %1529 = dma.vmem_to_hbm [thread:$0]  %s1524, 25088, %s1522, %s1510, 128, 128, 8
        $region32: #{tpu_custom_call.1} parent=23 // pred_fallthru
          _
      $region24: #{tpu_custom_call.1} parent=5 // pred_fallthru
        _
      %p1530 = scmp.le.s32.totalorder 2, %s13
      // Predicated region
      $region33: #{tpu_custom_call.1} parent=5 // pred_check
        %p1531 = pneg %p1530
      $region34: #{tpu_custom_call.1} parent=5 // pred_check_branch
        %1533 = sbr.rel (%p1531) target = $region36
      $region35: #{tpu_custom_call.1} parent=5 // pred_region
        %s1534 = ssub.s32 %s13, 2
        // Predicated region
        $region37: #{tpu_custom_call.1} parent=35 // pred_check
          %p1535 = pneg %p68
        $region38: #{tpu_custom_call.1} parent=35 // pred_check_branch
          %1537 = sbr.rel (%p1535) target = $region40
        $region39: #{tpu_custom_call.1} parent=35 // pred_region
          %s1538 = sand.u32 %s53, 1
          %s1539 = scalar_lea.sflag [#allocation4], %s1538
          %s1540 = sand.u32 %s53, 1
          %s1541 = smul.addr %s1540, 1568
          %s1542 = scalar_lea.vmem [#allocation5], %s1541
          %1543 = dma.done %s1539, 25088
        $region40: #{tpu_custom_call.1} parent=35 // pred_fallthru
          _
      $region36: #{tpu_custom_call.1} parent=5 // pred_fallthru
        _
    $region6: #{tpu_custom_call.1} parent=1 // loop_footer
      %s17 = sadd.s32 1, %s13
    $region7: #{tpu_custom_call.1} parent=1 // loop_footer_branch
      %12 = sbr.rel target = $region3
    $region8: #{tpu_custom_call.1} parent=1 // loop_exit
      _
    %1544 = vsyncpa [#allocation3], 1
    %s1545 = scalar_lea.sflag [#allocation3], 1
    %1546 = vsyncpa %s1545, 1
    %1547 = vsyncpa [#allocation4], 1
    %s1548 = scalar_lea.sflag [#allocation4], 1
    %1549 = vsyncpa %s1548, 1

</llo_original>
